<compile_context>
chip_gen: v7x
topology: tpu7x:2x2x1
jax: 0.10.0
libtpu: 0.0.40
codegen_flags: <defaults>
</compile_context>

<pallas_src>
import functools

import jax
import jax.numpy as jnp
from jax import lax
from jax.experimental import pallas as pl
from jax.experimental.pallas import tpu as pltpu

_VMEM = pl.BlockSpec(memory_space=pltpu.MemorySpace.VMEM)


# ---------------------------------------------------------------------------
# One-time pltpu.roll direction probe (static shifts are then chosen so the
# f/o gate alignment is correct regardless of the rotate convention).
# ---------------------------------------------------------------------------
def _roll_probe_kernel(x_ref, o_ref):
    o_ref[...] = pltpu.roll(x_ref[...], shift=32, axis=1)


@functools.lru_cache(maxsize=None)
def _detect_roll_mode():
    """Returns 'np' / 'flip' / 'none' (slice fallback) for pltpu.roll."""
    try:
        x = jnp.arange(128, dtype=jnp.float32).reshape(1, 128)
        out = pl.pallas_call(
            _roll_probe_kernel,
            out_shape=jax.ShapeDtypeStruct((1, 128), jnp.float32),
            in_specs=[_VMEM],
            out_specs=_VMEM,
        )(x)
        v = float(jax.device_get(out)[0, 0])
    except Exception:                      # roll unavailable -> slice fallback
        return "none"
    if v == 96.0:
        return "np"                        # roll(x, s)[k] == x[k - s]
    if v == 32.0:
        return "flip"                      # roll(x, s)[k] == x[k + s]
    return "none"


# ---------------------------------------------------------------------------
# Fused kernel: one-hot gathers -> char LSTM -> word LSTM -> tag head
# ---------------------------------------------------------------------------
def fused_tagger_kernel(sent_ids_ref, char_ids_ref,
                        word_tab_ref, char_tab_ref,
                        whh_c_t_ref, wih_w_char_ref,
                        whh_w_pad_ref, wtag_pad_ref, btag_ref,
                        out_ref, *, roll_mode):
    # sent_ids_ref  : (T, 1)          int32 word ids
    # char_ids_ref  : (L*T, 1)        int32 char ids, time-major (row = t*T + word)
    # word_tab_ref  : (Vw_pad, 4*Hw)  f32   word_emb @ Wih_w[:, :Ew]^T + b_w
    # char_tab_ref  : (Vc_pad, 4*Hc)  f32   char_emb @ Wih_c^T + b_c
    # whh_c_t_ref   : (Hc, 4*Hc)      f32
    # wih_w_char_ref: (Hc, 4*Hw)      f32   char-hidden rows of Wih_w^T
    # whh_w_pad_ref : (4*Hw, 4*Hw)    f32   rows >= Hw are zero (wide state)
    # wtag_pad_ref  : (4*Hw, n_tags)  f32   rows >= Hw are zero
    # btag_ref      : (1, n_tags)     f32
    # out_ref       : (T, n_tags)     log-softmaxed tag scores
    T = sent_ids_ref.shape[0]
    LT = char_ids_ref.shape[0]
    L = LT // T
    Vw = word_tab_ref.shape[0]
    Vc = char_tab_ref.shape[0]
    Hc = whh_c_t_ref.shape[0]
    H4c = whh_c_t_ref.shape[1]
    H4w = whh_w_pad_ref.shape[0]
    Hw = H4w // 4
    f32 = jnp.float32

    # ---- embedding lookups as one-hot MXU matmuls against pre-folded tables
    # (bias already folded into the tables: each one-hot row selects one row).
    sent_oh = (sent_ids_ref[...] ==
               lax.broadcasted_iota(jnp.int32, (T, Vw), 1)).astype(f32)        # (T, Vw)
    char_oh = (char_ids_ref[...] ==
               lax.broadcasted_iota(jnp.int32, (LT, Vc), 1)).astype(f32)       # (L*T, Vc)
    xw_c = jnp.dot(char_oh, char_tab_ref[...],
                   preferred_element_type=f32)                                 # (L*T, 4Hc)
    xw_word = jnp.dot(sent_oh, word_tab_ref[...],
                      preferred_element_type=f32)                              # (T, 4Hw)

    # ---- fused gate-activation constants (hoisted out of both loops) -------
    # sigmoid(x) = 0.5*tanh(0.5*x)+0.5 on i/f/o lanes; plain tanh on g lanes.
    # One tanh per step over the whole gate block instead of 4 EUP pushes.
    def _act_consts(h4, h):
        lane = lax.broadcasted_iota(jnp.int32, (1, h4), 1)
        is_g = (lane >= 2 * h) & (lane < 3 * h)
        scale = jnp.where(is_g, 1.0, 0.5).astype(f32)
        offset = jnp.where(is_g, 0.0, 0.5).astype(f32)
        return scale, offset

    sc_c, off_c = _act_consts(H4c, Hc)
    sc_w, off_w = _act_consts(H4w, Hw)

    # ---- char LSTM (batched over all T words; final hidden state only) -----
    # TODO(synk): real ragged word lengths need a per-word length mask; fixed
    # word_len is assumed, matching the synthetic test.
    whh_c = whh_c_t_ref[...]                      # hoisted loop-invariant read
    h_c = jnp.zeros((T, Hc), f32)
    c_c = jnp.zeros((T, Hc), f32)
    for t in range(L):                            # static trip count -> unrolled
        gates = xw_c[t * T:(t + 1) * T, :] + jnp.dot(
            h_c, whh_c, preferred_element_type=f32)                            # (T, 4Hc)
        a = jnp.tanh(gates * sc_c) * sc_c + off_c   # [sig(i) sig(f) tanh(g) sig(o)]
        ii = a[:, 0 * Hc:1 * Hc]
        ff = a[:, 1 * Hc:2 * Hc]
        gg = a[:, 2 * Hc:3 * Hc]
        oo = a[:, 3 * Hc:4 * Hc]
        c_c = ff * c_c + ii * gg
        h_c = oo * jnp.tanh(c_c)
    # h_c: (T, Hc) final char hidden state per word

    # ---- word LSTM input projection (hoisted; the concat(word_emb, char_h)
    #      is implicit in splitting W_ih into its word / char-hidden rows) ----
    xw_w = xw_word + jnp.dot(h_c, wih_w_char_ref[...],
                             preferred_element_type=f32)                       # (T, 4Hw)

    # ---- word LSTM (serial, batch = 1) --------------------------------------
    whh_w = whh_w_pad_ref[...]                    # (4Hw, 4Hw), rows >= Hw zero
    hs_list = []
    if roll_mode == "none":
        # Slice-based fallback (used only if pltpu.roll is unavailable).
        c_st = jnp.zeros((1, Hw), f32)
        h_wide = jnp.zeros((1, H4w), f32)
        zpad = jnp.zeros((1, 3 * Hw), f32)
        for t in range(T):
            gates = xw_w[t:t + 1, :] + jnp.dot(h_wide, whh_w,
                                               preferred_element_type=f32)     # (1, 4Hw)
            a = jnp.tanh(gates * sc_w) * sc_w + off_w
            ii = a[:, 0 * Hw:1 * Hw]
            ff = a[:, 1 * Hw:2 * Hw]
            gg = a[:, 2 * Hw:3 * Hw]
            oo = a[:, 3 * Hw:4 * Hw]
            c_st = ff * c_st + ii * gg
            h_wide = jnp.concatenate([oo * jnp.tanh(c_st), zpad], axis=1)
            hs_list.append(h_wide)
    else:
        # Wide-state recombination via XLU rolls: no lane slices in the loop.
        # Only lanes [0:Hw] of h/c are meaningful; the zero rows of the padded
        # W_hh / W_tag make the garbage lanes contribute exactly 0.
        sf = 3 * Hw if roll_mode == "np" else Hw       # bring sig(f) to lanes [0:Hw]
        so = Hw if roll_mode == "np" else 3 * Hw       # bring sig(o) to lanes [0:Hw]
        c_wide = jnp.zeros((1, H4w), f32)
        h_wide = jnp.zeros((1, H4w), f32)
        for t in range(T):
            gates = xw_w[t:t + 1, :] + jnp.dot(h_wide, whh_w,
                                               preferred_element_type=f32)     # (1, 4Hw)
            a = jnp.tanh(gates * sc_w) * sc_w + off_w
            g_al = pltpu.roll(a, shift=2 * Hw, axis=1)  # tanh(g) at lanes [0:Hw]
            f_al = pltpu.roll(a, shift=sf, axis=1)      # sig(f)  at lanes [0:Hw]
            o_al = pltpu.roll(a, shift=so, axis=1)      # sig(o)  at lanes [0:Hw]
            c_wide = f_al * c_wide + a * g_al           # lanes [0:Hw] = f*c + i*g
            h_wide = o_al * jnp.tanh(c_wide)            # lanes [0:Hw] = h
            hs_list.append(h_wide)

    # Hidden states kept in registers; single concat instead of a VMEM
    # scratch store/reload round trip.
    hs = jnp.concatenate(hs_list, axis=0)                                      # (T, 4Hw)

    # ---- tag head + log_softmax, once, on the whole block -------------------
    logits = jnp.dot(hs, wtag_pad_ref[...],
                     preferred_element_type=f32) + btag_ref[...]               # (T, n_tags)
    m = jnp.max(logits, axis=1, keepdims=True)
    lse = m + jnp.log(jnp.sum(jnp.exp(logits - m), axis=1, keepdims=True))
    out_ref[...] = logits - lse


# ---------------------------------------------------------------------------
# Wrapper
# ---------------------------------------------------------------------------
def _pad_rows(x, mult):
    pad = (-x.shape[0]) % mult
    if pad == 0:
        return x
    return jnp.pad(x, ((0, pad), (0, 0)))


def dual_lstm_tagger_forward(params, sentence, words):
    """sentence: (seq_len,) int32 word ids; words: (seq_len, word_len) int32 char ids."""
    return _forward_impl(params, sentence, words, _detect_roll_mode())


@functools.partial(jax.jit, static_argnums=(3,))
def _forward_impl(params, sentence, words, roll_mode):
    f32 = jnp.float32
    T = sentence.shape[0]
    L = words.shape[1]
    n_tags = params["hidden2tag_w"].shape[0]
    Ew = params["word_embedding"].shape[1]
    Hc = params["char_lstm_w_hh"].shape[1]
    Hw = params["lstm_w_hh"].shape[1]
    H4c, H4w = 4 * Hc, 4 * Hw

    sent_ids = sentence.astype(jnp.int32).reshape(T, 1)
    char_ids = words.astype(jnp.int32).T.reshape(L * T, 1)   # time-major flatten

    # --- parameter prep (tiny, outside the serial kernel) -------------------
    # Pre-folded per-id tables: embedding @ W_ih^T + (b_ih + b_hh).
    b_c = (params["char_lstm_b_ih"] + params["char_lstm_b_hh"]
           ).reshape(1, H4c).astype(f32)
    char_tab = (params["char_embedding"].astype(f32)
                @ params["char_lstm_w_ih"].T.astype(f32)) + b_c               # (Vc, 4Hc)

    wih_w_t = params["lstm_w_ih"].T.astype(f32)                               # (Ew+Hc, 4Hw)
    b_w = (params["lstm_b_ih"] + params["lstm_b_hh"]
           ).reshape(1, H4w).astype(f32)
    word_tab = params["word_embedding"].astype(f32) @ wih_w_t[:Ew, :] + b_w   # (Vw, 4Hw)
    wih_w_char = wih_w_t[Ew:, :]                                              # (Hc, 4Hw)

    # Pad one-hot contraction dims to a multiple of 8 (rows never selected).
    char_tab = _pad_rows(char_tab, 8)
    word_tab = _pad_rows(word_tab, 8)

    # Zero-row-padded recurrent / head weights for the wide word-LSTM state.
    whh_w_pad = jnp.zeros((H4w, H4w), f32).at[:Hw, :].set(
        params["lstm_w_hh"].T.astype(f32))
    wtag_pad = jnp.zeros((H4w, n_tags), f32).at[:Hw, :].set(
        params["hidden2tag_w"].T.astype(f32))

    kernel = functools.partial(fused_tagger_kernel, roll_mode=roll_mode)
    return pl.pallas_call(
        kernel,
        out_shape=jax.ShapeDtypeStruct((T, n_tags), f32),
        in_specs=[_VMEM] * 9,
        out_specs=_VMEM,
    )(sent_ids, char_ids, word_tab, char_tab,
      params["char_lstm_w_hh"].T.astype(f32),
      wih_w_char, whh_w_pad, wtag_pad,
      params["hidden2tag_b"].reshape(1, n_tags).astype(f32))


# ---------------------------------------------------------------------------
# Pure-JAX reference (for a correctness sanity check)
# ---------------------------------------------------------------------------
def _lstm_ref(x, w_ih, w_hh, b_ih, b_hh):
    H = w_hh.shape[1]

    def step(carry, xt):
        h, c = carry
        gates = xt @ w_ih.T + b_ih + h @ w_hh.T + b_hh
        i = jax.nn.sigmoid(gates[:, :H])
        f = jax.nn.sigmoid(gates[:, H:2 * H])
        g = jnp.tanh(gates[:, 2 * H:3 * H])
        o = jax.nn.sigmoid(gates[:, 3 * H:])
        c = f * c + i * g
        h = o * jnp.tanh(c)
        return (h, c), h

    B = x.shape[1]
    h0 = jnp.zeros((B, H), jnp.float32)
    (hT, _), hs = lax.scan(step, (h0, h0), x)
    return hs, hT


def reference_forward(params, sentence, words):
    embeds = jnp.take(params["word_embedding"], sentence, axis=0)
    char_embeds = jnp.take(params["char_embedding"], words, axis=0)
    char_embeds_tm = jnp.transpose(char_embeds, (1, 0, 2))
    _, char_hT = _lstm_ref(char_embeds_tm,
                           params["char_lstm_w_ih"], params["char_lstm_w_hh"],
                           params["char_lstm_b_ih"], params["char_lstm_b_hh"])
    combined = jnp.concatenate([embeds, char_hT], axis=1)
    hs, _ = _lstm_ref(combined[:, None, :],
                      params["lstm_w_ih"], params["lstm_w_hh"],
                      params["lstm_b_ih"], params["lstm_b_hh"])
    h = hs[:, 0, :]
    logits = h @ params["hidden2tag_w"].T + params["hidden2tag_b"]
    return jax.nn.log_softmax(logits, axis=1)


# ---------------------------------------------------------------------------
# Main
# ---------------------------------------------------------------------------
if __name__ == "__main__":
    word_vocab_size = 20
    char_vocab_size = 16
    tag_vocab_size = 6
    word_embedding_dim = 16
    word_hidden_dim = 32
    char_embedding_dim = 8
    char_hidden_dim = 16
    seq_len = 8        # words in the sentence
    word_len = 5       # chars per word (fixed for this synthetic example)

    key = jax.random.PRNGKey(0)
    ks = jax.random.split(key, 16)

    def uni(k, shape, bound):
        return jax.random.uniform(k, shape, jnp.float32, -bound, bound)

    kc = 1.0 / jnp.sqrt(char_hidden_dim)
    kw = 1.0 / jnp.sqrt(word_hidden_dim)
    kt = 1.0 / jnp.sqrt(word_hidden_dim)

    params = {
        "word_embedding": jax.random.normal(ks[0], (word_vocab_size, word_embedding_dim), jnp.float32),
        "char_embedding": jax.random.normal(ks[1], (char_vocab_size, char_embedding_dim), jnp.float32),
        # char LSTM (PyTorch gate order i, f, g, o)
        "char_lstm_w_ih": uni(ks[2], (4 * char_hidden_dim, char_embedding_dim), kc),
        "char_lstm_w_hh": uni(ks[3], (4 * char_hidden_dim, char_hidden_dim), kc),
        "char_lstm_b_ih": uni(ks[4], (4 * char_hidden_dim,), kc),
        "char_lstm_b_hh": uni(ks[5], (4 * char_hidden_dim,), kc),
        # word LSTM
        "lstm_w_ih": uni(ks[6], (4 * word_hidden_dim, word_embedding_dim + char_hidden_dim), kw),
        "lstm_w_hh": uni(ks[7], (4 * word_hidden_dim, word_hidden_dim), kw),
        "lstm_b_ih": uni(ks[8], (4 * word_hidden_dim,), kw),
        "lstm_b_hh": uni(ks[9], (4 * word_hidden_dim,), kw),
        # hidden2tag
        "hidden2tag_w": uni(ks[10], (tag_vocab_size, word_hidden_dim), kt),
        "hidden2tag_b": uni(ks[11], (tag_vocab_size,), kt),
    }

    sentence = jax.random.randint(ks[12], (seq_len,), 0, word_vocab_size, jnp.int32)
    words = jax.random.randint(ks[13], (seq_len, word_len), 0, char_vocab_size, jnp.int32)

    tag_scores = dual_lstm_tagger_forward(params, sentence, words)
    tag_scores = jax.block_until_ready(tag_scores)

    ref = jax.block_until_ready(reference_forward(params, sentence, words))
    assert tag_scores.shape == (seq_len, tag_vocab_size)
    assert jnp.allclose(tag_scores, ref, atol=1e-3, rtol=1e-3), (
        f"max abs diff {jnp.max(jnp.abs(tag_scores - ref))}")

    print("KERNEL_OK")
</pallas_src>

<mosaic_0001>
module attributes {stable_mosaic.version = 11 : i64} {
  func.func @_roll_probe_kernel(%arg0: memref<1x128xf32, #tpu.memory_space<vmem>>, %arg1: memref<1x128xf32, #tpu.memory_space<vmem>>) attributes {dimension_semantics = [], scalar_prefetch = 0 : i64, scratch_operands = 0 : i64, tpu.core_type = #tpu.core_type<tc>} {
    %c0 = arith.constant 0 : index
    %c0_0 = arith.constant 0 : index
    %0 = vector.load %arg0[%c0, %c0_0] : memref<1x128xf32, #tpu.memory_space<vmem>>, vector<1x128xf32>
    %c32_i32 = arith.constant 32 : i32
    %1 = tpu.dynamic_rotate %0 by %c32_i32 dim 1 : vector<1x128xf32>, i32 -> vector<1x128xf32>
    %c0_1 = arith.constant 0 : index
    %c0_2 = arith.constant 0 : index
    %2 = vector.load %arg1[%c0_1, %c0_2] : memref<1x128xf32, #tpu.memory_space<vmem>>, vector<1x128xf32>
    tpu.vector_store %arg1[%c0_1, %c0_2], %1 {strides = array<i32>} : memref<1x128xf32, #tpu.memory_space<vmem>>, vector<1x128xf32>,
    return
  }
}

module attributes {stable_mosaic.version = 11 : i64} {
  func.func @fused_tagger_kernel(%arg0: memref<8x1xi32, #tpu.memory_space<vmem>>, %arg1: memref<40x1xi32, #tpu.memory_space<vmem>>, %arg2: memref<24x128xf32, #tpu.memory_space<vmem>>, %arg3: memref<16x64xf32, #tpu.memory_space<vmem>>, %arg4: memref<16x64xf32, #tpu.memory_space<vmem>>, %arg5: memref<16x128xf32, #tpu.memory_space<vmem>>, %arg6: memref<128x128xf32, #tpu.memory_space<vmem>>, %arg7: memref<128x6xf32, #tpu.memory_space<vmem>>, %arg8: memref<1x6xf32, #tpu.memory_space<vmem>>, %arg9: memref<8x6xf32, #tpu.memory_space<vmem>>) attributes {dimension_semantics = [], scalar_prefetch = 0 : i64, scratch_operands = 0 : i64, tpu.core_type = #tpu.core_type<tc>} {
    %c0 = arith.constant 0 : index
    %c0_0 = arith.constant 0 : index
    %0 = vector.load %arg0[%c0, %c0_0] : memref<8x1xi32, #tpu.memory_space<vmem>>, vector<8x1xi32>
    %1 = tpu.iota {dimensions = array<i32: 1>} : vector<8x24xi32>
    %2 = vector.broadcast %0 : vector<8x1xi32> to vector<8x24xi32>
    %3 = arith.cmpi eq, %2, %1 : vector<8x24xi32>
    %4 = arith.extui %3 : vector<8x24xi1> to vector<8x24xi32>
    %5 = arith.sitofp %4 : vector<8x24xi32> to vector<8x24xf32>
    %c0_1 = arith.constant 0 : index
    %c0_2 = arith.constant 0 : index
    %6 = vector.load %arg1[%c0_1, %c0_2] : memref<40x1xi32, #tpu.memory_space<vmem>>, vector<40x1xi32>
    %7 = tpu.iota {dimensions = array<i32: 1>} : vector<40x16xi32>
    %8 = vector.broadcast %6 : vector<40x1xi32> to vector<40x16xi32>
    %9 = arith.cmpi eq, %8, %7 : vector<40x16xi32>
    %10 = arith.extui %9 : vector<40x16xi1> to vector<40x16xi32>
    %11 = arith.sitofp %10 : vector<40x16xi32> to vector<40x16xf32>
    %c0_3 = arith.constant 0 : index
    %c0_4 = arith.constant 0 : index
    %12 = vector.load %arg3[%c0_3, %c0_4] : memref<16x64xf32, #tpu.memory_space<vmem>>, vector<16x64xf32>
    %cst = arith.constant dense<0.000000e+00> : vector<40x64xf32>
    %13 = tpu.matmul %11, %12, %cst {dimension_numbers = #tpu.dot_dimension_numbers<[1], [0], [0], [1], [0, 0, 1, 1], [], []>} : vector<40x16xf32>, vector<16x64xf32>, vector<40x64xf32> -> vector<40x64xf32>
    %c0_5 = arith.constant 0 : index
    %c0_6 = arith.constant 0 : index
    %14 = vector.load %arg2[%c0_5, %c0_6] : memref<24x128xf32, #tpu.memory_space<vmem>>, vector<24x128xf32>
    %cst_7 = arith.constant dense<0.000000e+00> : vector<8x128xf32>
    %15 = tpu.matmul %5, %14, %cst_7 {dimension_numbers = #tpu.dot_dimension_numbers<[1], [0], [0], [1], [0, 0, 1, 1], [], []>} : vector<8x24xf32>, vector<24x128xf32>, vector<8x128xf32> -> vector<8x128xf32>
    %16 = tpu.iota {dimensions = array<i32: 1>} : vector<1x64xi32>
    %c32_i32 = arith.constant 32 : i32
    %17 = vector.broadcast %c32_i32 : i32 to vector<1x64xi32>
    %18 = arith.cmpi sge, %16, %17 : vector<1x64xi32>
    %c48_i32 = arith.constant 48 : i32
    %19 = vector.broadcast %c48_i32 : i32 to vector<1x64xi32>
    %20 = arith.cmpi slt, %16, %19 : vector<1x64xi32>
    %21 = arith.andi %18, %20 : vector<1x64xi1>
    %cst_8 = arith.constant 1.000000e+00 : f32
    %cst_9 = arith.constant 5.000000e-01 : f32
    %22 = vector.broadcast %cst_8 : f32 to vector<1x64xf32>
    %23 = vector.broadcast %cst_9 : f32 to vector<1x64xf32>
    %24 = arith.select %21, %22, %23 : vector<1x64xi1>, vector<1x64xf32>
    %cst_10 = arith.constant 0.000000e+00 : f32
    %cst_11 = arith.constant 5.000000e-01 : f32
    %25 = vector.broadcast %cst_10 : f32 to vector<1x64xf32>
    %26 = vector.broadcast %cst_11 : f32 to vector<1x64xf32>
    %27 = arith.select %21, %25, %26 : vector<1x64xi1>, vector<1x64xf32>
    %28 = tpu.iota {dimensions = array<i32: 1>} : vector<1x128xi32>
    %c64_i32 = arith.constant 64 : i32
    %29 = vector.broadcast %c64_i32 : i32 to vector<1x128xi32>
    %30 = arith.cmpi sge, %28, %29 : vector<1x128xi32>
    %c96_i32 = arith.constant 96 : i32
    %31 = vector.broadcast %c96_i32 : i32 to vector<1x128xi32>
    %32 = arith.cmpi slt, %28, %31 : vector<1x128xi32>
    %33 = arith.andi %30, %32 : vector<1x128xi1>
    %cst_12 = arith.constant 1.000000e+00 : f32
    %cst_13 = arith.constant 5.000000e-01 : f32
    %34 = vector.broadcast %cst_12 : f32 to vector<1x128xf32>
    %35 = vector.broadcast %cst_13 : f32 to vector<1x128xf32>
    %36 = arith.select %33, %34, %35 : vector<1x128xi1>, vector<1x128xf32>
    %cst_14 = arith.constant 0.000000e+00 : f32
    %cst_15 = arith.constant 5.000000e-01 : f32
    %37 = vector.broadcast %cst_14 : f32 to vector<1x128xf32>
    %38 = vector.broadcast %cst_15 : f32 to vector<1x128xf32>
    %39 = arith.select %33, %37, %38 : vector<1x128xi1>, vector<1x128xf32>
    %c0_16 = arith.constant 0 : index
    %c0_17 = arith.constant 0 : index
    %40 = vector.load %arg4[%c0_16, %c0_17] : memref<16x64xf32, #tpu.memory_space<vmem>>, vector<16x64xf32>
    %cst_18 = arith.constant 0.000000e+00 : f32
    %41 = vector.broadcast %cst_18 : f32 to vector<8x16xf32>
    %cst_19 = arith.constant 0.000000e+00 : f32
    %42 = vector.broadcast %cst_19 : f32 to vector<8x16xf32>
    %43 = vector.extract_strided_slice %13 {offsets = [0, 0], sizes = [8, 64], strides = [1, 1]} : vector<40x64xf32> to vector<8x64xf32>
    %cst_20 = arith.constant dense<0.000000e+00> : vector<8x64xf32>
    %44 = tpu.matmul %41, %40, %cst_20 {dimension_numbers = #tpu.dot_dimension_numbers<[1], [0], [0], [1], [0, 0, 1, 1], [], []>} : vector<8x16xf32>, vector<16x64xf32>, vector<8x64xf32> -> vector<8x64xf32>
    %45 = arith.addf %43, %44 : vector<8x64xf32>
    %46 = vector.broadcast %24 : vector<1x64xf32> to vector<8x64xf32>
    %47 = arith.mulf %45, %46 : vector<8x64xf32>
    %48 = math.tanh %47 : vector<8x64xf32>
    %49 = vector.broadcast %24 : vector<1x64xf32> to vector<8x64xf32>
    %50 = arith.mulf %48, %49 : vector<8x64xf32>
    %51 = vector.broadcast %27 : vector<1x64xf32> to vector<8x64xf32>
    %52 = arith.addf %50, %51 : vector<8x64xf32>
    %53 = vector.extract_strided_slice %52 {offsets = [0, 0], sizes = [8, 16], strides = [1, 1]} : vector<8x64xf32> to vector<8x16xf32>
    %54 = vector.extract_strided_slice %52 {offsets = [0, 16], sizes = [8, 16], strides = [1, 1]} : vector<8x64xf32> to vector<8x16xf32>
    %55 = vector.extract_strided_slice %52 {offsets = [0, 32], sizes = [8, 16], strides = [1, 1]} : vector<8x64xf32> to vector<8x16xf32>
    %56 = vector.extract_strided_slice %52 {offsets = [0, 48], sizes = [8, 16], strides = [1, 1]} : vector<8x64xf32> to vector<8x16xf32>
    %57 = arith.mulf %54, %42 : vector<8x16xf32>
    %58 = arith.mulf %53, %55 : vector<8x16xf32>
    %59 = arith.addf %57, %58 : vector<8x16xf32>
    %60 = math.tanh %59 : vector<8x16xf32>
    %61 = arith.mulf %56, %60 : vector<8x16xf32>
    %62 = vector.extract_strided_slice %13 {offsets = [8, 0], sizes = [8, 64], strides = [1, 1]} : vector<40x64xf32> to vector<8x64xf32>
    %cst_21 = arith.constant dense<0.000000e+00> : vector<8x64xf32>
    %63 = tpu.matmul %61, %40, %cst_21 {dimension_numbers = #tpu.dot_dimension_numbers<[1], [0], [0], [1], [0, 0, 1, 1], [], []>} : vector<8x16xf32>, vector<16x64xf32>, vector<8x64xf32> -> vector<8x64xf32>
    %64 = arith.addf %62, %63 : vector<8x64xf32>
    %65 = vector.broadcast %24 : vector<1x64xf32> to vector<8x64xf32>
    %66 = arith.mulf %64, %65 : vector<8x64xf32>
    %67 = math.tanh %66 : vector<8x64xf32>
    %68 = vector.broadcast %24 : vector<1x64xf32> to vector<8x64xf32>
    %69 = arith.mulf %67, %68 : vector<8x64xf32>
    %70 = vector.broadcast %27 : vector<1x64xf32> to vector<8x64xf32>
    %71 = arith.addf %69, %70 : vector<8x64xf32>
    %72 = vector.extract_strided_slice %71 {offsets = [0, 0], sizes = [8, 16], strides = [1, 1]} : vector<8x64xf32> to vector<8x16xf32>
    %73 = vector.extract_strided_slice %71 {offsets = [0, 16], sizes = [8, 16], strides = [1, 1]} : vector<8x64xf32> to vector<8x16xf32>
    %74 = vector.extract_strided_slice %71 {offsets = [0, 32], sizes = [8, 16], strides = [1, 1]} : vector<8x64xf32> to vector<8x16xf32>
    %75 = vector.extract_strided_slice %71 {offsets = [0, 48], sizes = [8, 16], strides = [1, 1]} : vector<8x64xf32> to vector<8x16xf32>
    %76 = arith.mulf %73, %59 : vector<8x16xf32>
    %77 = arith.mulf %72, %74 : vector<8x16xf32>
    %78 = arith.addf %76, %77 : vector<8x16xf32>
    %79 = math.tanh %78 : vector<8x16xf32>
    %80 = arith.mulf %75, %79 : vector<8x16xf32>
    %81 = vector.extract_strided_slice %13 {offsets = [16, 0], sizes = [8, 64], strides = [1, 1]} : vector<40x64xf32> to vector<8x64xf32>
    %cst_22 = arith.constant dense<0.000000e+00> : vector<8x64xf32>
    %82 = tpu.matmul %80, %40, %cst_22 {dimension_numbers = #tpu.dot_dimension_numbers<[1], [0], [0], [1], [0, 0, 1, 1], [], []>} : vector<8x16xf32>, vector<16x64xf32>, vector<8x64xf32> -> vector<8x64xf32>
    %83 = arith.addf %81, %82 : vector<8x64xf32>
    %84 = vector.broadcast %24 : vector<1x64xf32> to vector<8x64xf32>
    %85 = arith.mulf %83, %84 : vector<8x64xf32>
    %86 = math.tanh %85 : vector<8x64xf32>
    %87 = vector.broadcast %24 : vector<1x64xf32> to vector<8x64xf32>
    %88 = arith.mulf %86, %87 : vector<8x64xf32>
    %89 = vector.broadcast %27 : vector<1x64xf32> to vector<8x64xf32>
    %90 = arith.addf %88, %89 : vector<8x64xf32>
    %91 = vector.extract_strided_slice %90 {offsets = [0, 0], sizes = [8, 16], strides = [1, 1]} : vector<8x64xf32> to vector<8x16xf32>
    %92 = vector.extract_strided_slice %90 {offsets = [0, 16], sizes = [8, 16], strides = [1, 1]} : vector<8x64xf32> to vector<8x16xf32>
    %93 = vector.extract_strided_slice %90 {offsets = [0, 32], sizes = [8, 16], strides = [1, 1]} : vector<8x64xf32> to vector<8x16xf32>
    %94 = vector.extract_strided_slice %90 {offsets = [0, 48], sizes = [8, 16], strides = [1, 1]} : vector<8x64xf32> to vector<8x16xf32>
    %95 = arith.mulf %92, %78 : vector<8x16xf32>
    %96 = arith.mulf %91, %93 : vector<8x16xf32>
    %97 = arith.addf %95, %96 : vector<8x16xf32>
    %98 = math.tanh %97 : vector<8x16xf32>
    %99 = arith.mulf %94, %98 : vector<8x16xf32>
    %100 = vector.extract_strided_slice %13 {offsets = [24, 0], sizes = [8, 64], strides = [1, 1]} : vector<40x64xf32> to vector<8x64xf32>
    %cst_23 = arith.constant dense<0.000000e+00> : vector<8x64xf32>
    %101 = tpu.matmul %99, %40, %cst_23 {dimension_numbers = #tpu.dot_dimension_numbers<[1], [0], [0], [1], [0, 0, 1, 1], [], []>} : vector<8x16xf32>, vector<16x64xf32>, vector<8x64xf32> -> vector<8x64xf32>
    %102 = arith.addf %100, %101 : vector<8x64xf32>
    %103 = vector.broadcast %24 : vector<1x64xf32> to vector<8x64xf32>
    %104 = arith.mulf %102, %103 : vector<8x64xf32>
    %105 = math.tanh %104 : vector<8x64xf32>
    %106 = vector.broadcast %24 : vector<1x64xf32> to vector<8x64xf32>
    %107 = arith.mulf %105, %106 : vector<8x64xf32>
    %108 = vector.broadcast %27 : vector<1x64xf32> to vector<8x64xf32>
    %109 = arith.addf %107, %108 : vector<8x64xf32>
    %110 = vector.extract_strided_slice %109 {offsets = [0, 0], sizes = [8, 16], strides = [1, 1]} : vector<8x64xf32> to vector<8x16xf32>
    %111 = vector.extract_strided_slice %109 {offsets = [0, 16], sizes = [8, 16], strides = [1, 1]} : vector<8x64xf32> to vector<8x16xf32>
    %112 = vector.extract_strided_slice %109 {offsets = [0, 32], sizes = [8, 16], strides = [1, 1]} : vector<8x64xf32> to vector<8x16xf32>
    %113 = vector.extract_strided_slice %109 {offsets = [0, 48], sizes = [8, 16], strides = [1, 1]} : vector<8x64xf32> to vector<8x16xf32>
    %114 = arith.mulf %111, %97 : vector<8x16xf32>
    %115 = arith.mulf %110, %112 : vector<8x16xf32>
    %116 = arith.addf %114, %115 : vector<8x16xf32>
    %117 = math.tanh %116 : vector<8x16xf32>
    %118 = arith.mulf %113, %117 : vector<8x16xf32>
    %119 = vector.extract_strided_slice %13 {offsets = [32, 0], sizes = [8, 64], strides = [1, 1]} : vector<40x64xf32> to vector<8x64xf32>
    %cst_24 = arith.constant dense<0.000000e+00> : vector<8x64xf32>
    %120 = tpu.matmul %118, %40, %cst_24 {dimension_numbers = #tpu.dot_dimension_numbers<[1], [0], [0], [1], [0, 0, 1, 1], [], []>} : vector<8x16xf32>, vector<16x64xf32>, vector<8x64xf32> -> vector<8x64xf32>
    %121 = arith.addf %119, %120 : vector<8x64xf32>
    %122 = vector.broadcast %24 : vector<1x64xf32> to vector<8x64xf32>
    %123 = arith.mulf %121, %122 : vector<8x64xf32>
    %124 = math.tanh %123 : vector<8x64xf32>
    %125 = vector.broadcast %24 : vector<1x64xf32> to vector<8x64xf32>
    %126 = arith.mulf %124, %125 : vector<8x64xf32>
    %127 = vector.broadcast %27 : vector<1x64xf32> to vector<8x64xf32>
    %128 = arith.addf %126, %127 : vector<8x64xf32>
    %129 = vector.extract_strided_slice %128 {offsets = [0, 0], sizes = [8, 16], strides = [1, 1]} : vector<8x64xf32> to vector<8x16xf32>
    %130 = vector.extract_strided_slice %128 {offsets = [0, 16], sizes = [8, 16], strides = [1, 1]} : vector<8x64xf32> to vector<8x16xf32>
    %131 = vector.extract_strided_slice %128 {offsets = [0, 32], sizes = [8, 16], strides = [1, 1]} : vector<8x64xf32> to vector<8x16xf32>
    %132 = vector.extract_strided_slice %128 {offsets = [0, 48], sizes = [8, 16], strides = [1, 1]} : vector<8x64xf32> to vector<8x16xf32>
    %133 = arith.mulf %130, %116 : vector<8x16xf32>
    %134 = arith.mulf %129, %131 : vector<8x16xf32>
    %135 = arith.addf %133, %134 : vector<8x16xf32>
    %136 = math.tanh %135 : vector<8x16xf32>
    %137 = arith.mulf %132, %136 : vector<8x16xf32>
    %c0_25 = arith.constant 0 : index
    %c0_26 = arith.constant 0 : index
    %138 = vector.load %arg5[%c0_25, %c0_26] : memref<16x128xf32, #tpu.memory_space<vmem>>, vector<16x128xf32>
    %cst_27 = arith.constant dense<0.000000e+00> : vector<8x128xf32>
    %139 = tpu.matmul %137, %138, %cst_27 {dimension_numbers = #tpu.dot_dimension_numbers<[1], [0], [0], [1], [0, 0, 1, 1], [], []>} : vector<8x16xf32>, vector<16x128xf32>, vector<8x128xf32> -> vector<8x128xf32>
    %140 = arith.addf %15, %139 : vector<8x128xf32>
    %c0_28 = arith.constant 0 : index
    %c0_29 = arith.constant 0 : index
    %141 = vector.load %arg6[%c0_28, %c0_29] : memref<128x128xf32, #tpu.memory_space<vmem>>, vector<128x128xf32>
    %cst_30 = arith.constant 0.000000e+00 : f32
    %142 = vector.broadcast %cst_30 : f32 to vector<1x32xf32>
    %cst_31 = arith.constant 0.000000e+00 : f32
    %143 = vector.broadcast %cst_31 : f32 to vector<1x128xf32>
    %cst_32 = arith.constant 0.000000e+00 : f32
    %144 = vector.broadcast %cst_32 : f32 to vector<1x96xf32>
    %145 = vector.extract_strided_slice %140 {offsets = [0, 0], sizes = [1, 128], strides = [1, 1]} : vector<8x128xf32> to vector<1x128xf32>
    %cst_33 = arith.constant dense<0.000000e+00> : vector<1x128xf32>
    %146 = tpu.matmul %143, %141, %cst_33 {dimension_numbers = #tpu.dot_dimension_numbers<[1], [0], [0], [1], [0, 0, 1, 1], [], []>} : vector<1x128xf32>, vector<128x128xf32>, vector<1x128xf32> -> vector<1x128xf32>
    %147 = arith.addf %145, %146 : vector<1x128xf32>
    %148 = arith.mulf %147, %36 : vector<1x128xf32>
    %149 = math.tanh %148 : vector<1x128xf32>
    %150 = arith.mulf %149, %36 : vector<1x128xf32>
    %151 = arith.addf %150, %39 : vector<1x128xf32>
    %152 = vector.extract_strided_slice %151 {offsets = [0, 0], sizes = [1, 32], strides = [1, 1]} : vector<1x128xf32> to vector<1x32xf32>
    %153 = vector.extract_strided_slice %151 {offsets = [0, 32], sizes = [1, 32], strides = [1, 1]} : vector<1x128xf32> to vector<1x32xf32>
    %154 = vector.extract_strided_slice %151 {offsets = [0, 64], sizes = [1, 32], strides = [1, 1]} : vector<1x128xf32> to vector<1x32xf32>
    %155 = vector.extract_strided_slice %151 {offsets = [0, 96], sizes = [1, 32], strides = [1, 1]} : vector<1x128xf32> to vector<1x32xf32>
    %156 = arith.mulf %153, %142 : vector<1x32xf32>
    %157 = arith.mulf %152, %154 : vector<1x32xf32>
    %158 = arith.addf %156, %157 : vector<1x32xf32>
    %159 = math.tanh %158 : vector<1x32xf32>
    %160 = arith.mulf %155, %159 : vector<1x32xf32>
    %161 = tpu.concatenate %160, %144 in 1 : vector<1x32xf32>, vector<1x96xf32> -> vector<1x128xf32>
    %162 = vector.extract_strided_slice %140 {offsets = [1, 0], sizes = [1, 128], strides = [1, 1]} : vector<8x128xf32> to vector<1x128xf32>
    %cst_34 = arith.constant dense<0.000000e+00> : vector<1x128xf32>
    %163 = tpu.matmul %161, %141, %cst_34 {dimension_numbers = #tpu.dot_dimension_numbers<[1], [0], [0], [1], [0, 0, 1, 1], [], []>} : vector<1x128xf32>, vector<128x128xf32>, vector<1x128xf32> -> vector<1x128xf32>
    %164 = arith.addf %162, %163 : vector<1x128xf32>
    %165 = arith.mulf %164, %36 : vector<1x128xf32>
    %166 = math.tanh %165 : vector<1x128xf32>
    %167 = arith.mulf %166, %36 : vector<1x128xf32>
    %168 = arith.addf %167, %39 : vector<1x128xf32>
    %169 = vector.extract_strided_slice %168 {offsets = [0, 0], sizes = [1, 32], strides = [1, 1]} : vector<1x128xf32> to vector<1x32xf32>
    %170 = vector.extract_strided_slice %168 {offsets = [0, 32], sizes = [1, 32], strides = [1, 1]} : vector<1x128xf32> to vector<1x32xf32>
    %171 = vector.extract_strided_slice %168 {offsets = [0, 64], sizes = [1, 32], strides = [1, 1]} : vector<1x128xf32> to vector<1x32xf32>
    %172 = vector.extract_strided_slice %168 {offsets = [0, 96], sizes = [1, 32], strides = [1, 1]} : vector<1x128xf32> to vector<1x32xf32>
    %173 = arith.mulf %170, %158 : vector<1x32xf32>
    %174 = arith.mulf %169, %171 : vector<1x32xf32>
    %175 = arith.addf %173, %174 : vector<1x32xf32>
    %176 = math.tanh %175 : vector<1x32xf32>
    %177 = arith.mulf %172, %176 : vector<1x32xf32>
    %178 = tpu.concatenate %177, %144 in 1 : vector<1x32xf32>, vector<1x96xf32> -> vector<1x128xf32>
    %179 = vector.extract_strided_slice %140 {offsets = [2, 0], sizes = [1, 128], strides = [1, 1]} : vector<8x128xf32> to vector<1x128xf32>
    %cst_35 = arith.constant dense<0.000000e+00> : vector<1x128xf32>
    %180 = tpu.matmul %178, %141, %cst_35 {dimension_numbers = #tpu.dot_dimension_numbers<[1], [0], [0], [1], [0, 0, 1, 1], [], []>} : vector<1x128xf32>, vector<128x128xf32>, vector<1x128xf32> -> vector<1x128xf32>
    %181 = arith.addf %179, %180 : vector<1x128xf32>
    %182 = arith.mulf %181, %36 : vector<1x128xf32>
    %183 = math.tanh %182 : vector<1x128xf32>
    %184 = arith.mulf %183, %36 : vector<1x128xf32>
    %185 = arith.addf %184, %39 : vector<1x128xf32>
    %186 = vector.extract_strided_slice %185 {offsets = [0, 0], sizes = [1, 32], strides = [1, 1]} : vector<1x128xf32> to vector<1x32xf32>
    %187 = vector.extract_strided_slice %185 {offsets = [0, 32], sizes = [1, 32], strides = [1, 1]} : vector<1x128xf32> to vector<1x32xf32>
    %188 = vector.extract_strided_slice %185 {offsets = [0, 64], sizes = [1, 32], strides = [1, 1]} : vector<1x128xf32> to vector<1x32xf32>
    %189 = vector.extract_strided_slice %185 {offsets = [0, 96], sizes = [1, 32], strides = [1, 1]} : vector<1x128xf32> to vector<1x32xf32>
    %190 = arith.mulf %187, %175 : vector<1x32xf32>
    %191 = arith.mulf %186, %188 : vector<1x32xf32>
    %192 = arith.addf %190, %191 : vector<1x32xf32>
    %193 = math.tanh %192 : vector<1x32xf32>
    %194 = arith.mulf %189, %193 : vector<1x32xf32>
    %195 = tpu.concatenate %194, %144 in 1 : vector<1x32xf32>, vector<1x96xf32> -> vector<1x128xf32>
    %196 = vector.extract_strided_slice %140 {offsets = [3, 0], sizes = [1, 128], strides = [1, 1]} : vector<8x128xf32> to vector<1x128xf32>
    %cst_36 = arith.constant dense<0.000000e+00> : vector<1x128xf32>
    %197 = tpu.matmul %195, %141, %cst_36 {dimension_numbers = #tpu.dot_dimension_numbers<[1], [0], [0], [1], [0, 0, 1, 1], [], []>} : vector<1x128xf32>, vector<128x128xf32>, vector<1x128xf32> -> vector<1x128xf32>
    %198 = arith.addf %196, %197 : vector<1x128xf32>
    %199 = arith.mulf %198, %36 : vector<1x128xf32>
    %200 = math.tanh %199 : vector<1x128xf32>
    %201 = arith.mulf %200, %36 : vector<1x128xf32>
    %202 = arith.addf %201, %39 : vector<1x128xf32>
    %203 = vector.extract_strided_slice %202 {offsets = [0, 0], sizes = [1, 32], strides = [1, 1]} : vector<1x128xf32> to vector<1x32xf32>
    %204 = vector.extract_strided_slice %202 {offsets = [0, 32], sizes = [1, 32], strides = [1, 1]} : vector<1x128xf32> to vector<1x32xf32>
    %205 = vector.extract_strided_slice %202 {offsets = [0, 64], sizes = [1, 32], strides = [1, 1]} : vector<1x128xf32> to vector<1x32xf32>
    %206 = vector.extract_strided_slice %202 {offsets = [0, 96], sizes = [1, 32], strides = [1, 1]} : vector<1x128xf32> to vector<1x32xf32>
    %207 = arith.mulf %204, %192 : vector<1x32xf32>
    %208 = arith.mulf %203, %205 : vector<1x32xf32>
    %209 = arith.addf %207, %208 : vector<1x32xf32>
    %210 = math.tanh %209 : vector<1x32xf32>
    %211 = arith.mulf %206, %210 : vector<1x32xf32>
    %212 = tpu.concatenate %211, %144 in 1 : vector<1x32xf32>, vector<1x96xf32> -> vector<1x128xf32>
    %213 = vector.extract_strided_slice %140 {offsets = [4, 0], sizes = [1, 128], strides = [1, 1]} : vector<8x128xf32> to vector<1x128xf32>
    %cst_37 = arith.constant dense<0.000000e+00> : vector<1x128xf32>
    %214 = tpu.matmul %212, %141, %cst_37 {dimension_numbers = #tpu.dot_dimension_numbers<[1], [0], [0], [1], [0, 0, 1, 1], [], []>} : vector<1x128xf32>, vector<128x128xf32>, vector<1x128xf32> -> vector<1x128xf32>
    %215 = arith.addf %213, %214 : vector<1x128xf32>
    %216 = arith.mulf %215, %36 : vector<1x128xf32>
    %217 = math.tanh %216 : vector<1x128xf32>
    %218 = arith.mulf %217, %36 : vector<1x128xf32>
    %219 = arith.addf %218, %39 : vector<1x128xf32>
    %220 = vector.extract_strided_slice %219 {offsets = [0, 0], sizes = [1, 32], strides = [1, 1]} : vector<1x128xf32> to vector<1x32xf32>
    %221 = vector.extract_strided_slice %219 {offsets = [0, 32], sizes = [1, 32], strides = [1, 1]} : vector<1x128xf32> to vector<1x32xf32>
    %222 = vector.extract_strided_slice %219 {offsets = [0, 64], sizes = [1, 32], strides = [1, 1]} : vector<1x128xf32> to vector<1x32xf32>
    %223 = vector.extract_strided_slice %219 {offsets = [0, 96], sizes = [1, 32], strides = [1, 1]} : vector<1x128xf32> to vector<1x32xf32>
    %224 = arith.mulf %221, %209 : vector<1x32xf32>
    %225 = arith.mulf %220, %222 : vector<1x32xf32>
    %226 = arith.addf %224, %225 : vector<1x32xf32>
    %227 = math.tanh %226 : vector<1x32xf32>
    %228 = arith.mulf %223, %227 : vector<1x32xf32>
    %229 = tpu.concatenate %228, %144 in 1 : vector<1x32xf32>, vector<1x96xf32> -> vector<1x128xf32>
    %230 = vector.extract_strided_slice %140 {offsets = [5, 0], sizes = [1, 128], strides = [1, 1]} : vector<8x128xf32> to vector<1x128xf32>
    %cst_38 = arith.constant dense<0.000000e+00> : vector<1x128xf32>
    %231 = tpu.matmul %229, %141, %cst_38 {dimension_numbers = #tpu.dot_dimension_numbers<[1], [0], [0], [1], [0, 0, 1, 1], [], []>} : vector<1x128xf32>, vector<128x128xf32>, vector<1x128xf32> -> vector<1x128xf32>
    %232 = arith.addf %230, %231 : vector<1x128xf32>
    %233 = arith.mulf %232, %36 : vector<1x128xf32>
    %234 = math.tanh %233 : vector<1x128xf32>
    %235 = arith.mulf %234, %36 : vector<1x128xf32>
    %236 = arith.addf %235, %39 : vector<1x128xf32>
    %237 = vector.extract_strided_slice %236 {offsets = [0, 0], sizes = [1, 32], strides = [1, 1]} : vector<1x128xf32> to vector<1x32xf32>
    %238 = vector.extract_strided_slice %236 {offsets = [0, 32], sizes = [1, 32], strides = [1, 1]} : vector<1x128xf32> to vector<1x32xf32>
    %239 = vector.extract_strided_slice %236 {offsets = [0, 64], sizes = [1, 32], strides = [1, 1]} : vector<1x128xf32> to vector<1x32xf32>
    %240 = vector.extract_strided_slice %236 {offsets = [0, 96], sizes = [1, 32], strides = [1, 1]} : vector<1x128xf32> to vector<1x32xf32>
    %241 = arith.mulf %238, %226 : vector<1x32xf32>
    %242 = arith.mulf %237, %239 : vector<1x32xf32>
    %243 = arith.addf %241, %242 : vector<1x32xf32>
    %244 = math.tanh %243 : vector<1x32xf32>
    %245 = arith.mulf %240, %244 : vector<1x32xf32>
    %246 = tpu.concatenate %245, %144 in 1 : vector<1x32xf32>, vector<1x96xf32> -> vector<1x128xf32>
    %247 = vector.extract_strided_slice %140 {offsets = [6, 0], sizes = [1, 128], strides = [1, 1]} : vector<8x128xf32> to vector<1x128xf32>
    %cst_39 = arith.constant dense<0.000000e+00> : vector<1x128xf32>
    %248 = tpu.matmul %246, %141, %cst_39 {dimension_numbers = #tpu.dot_dimension_numbers<[1], [0], [0], [1], [0, 0, 1, 1], [], []>} : vector<1x128xf32>, vector<128x128xf32>, vector<1x128xf32> -> vector<1x128xf32>
    %249 = arith.addf %247, %248 : vector<1x128xf32>
    %250 = arith.mulf %249, %36 : vector<1x128xf32>
    %251 = math.tanh %250 : vector<1x128xf32>
    %252 = arith.mulf %251, %36 : vector<1x128xf32>
    %253 = arith.addf %252, %39 : vector<1x128xf32>
    %254 = vector.extract_strided_slice %253 {offsets = [0, 0], sizes = [1, 32], strides = [1, 1]} : vector<1x128xf32> to vector<1x32xf32>
    %255 = vector.extract_strided_slice %253 {offsets = [0, 32], sizes = [1, 32], strides = [1, 1]} : vector<1x128xf32> to vector<1x32xf32>
    %256 = vector.extract_strided_slice %253 {offsets = [0, 64], sizes = [1, 32], strides = [1, 1]} : vector<1x128xf32> to vector<1x32xf32>
    %257 = vector.extract_strided_slice %253 {offsets = [0, 96], sizes = [1, 32], strides = [1, 1]} : vector<1x128xf32> to vector<1x32xf32>
    %258 = arith.mulf %255, %243 : vector<1x32xf32>
    %259 = arith.mulf %254, %256 : vector<1x32xf32>
    %260 = arith.addf %258, %259 : vector<1x32xf32>
    %261 = math.tanh %260 : vector<1x32xf32>
    %262 = arith.mulf %257, %261 : vector<1x32xf32>
    %263 = tpu.concatenate %262, %144 in 1 : vector<1x32xf32>, vector<1x96xf32> -> vector<1x128xf32>
    %264 = vector.extract_strided_slice %140 {offsets = [7, 0], sizes = [1, 128], strides = [1, 1]} : vector<8x128xf32> to vector<1x128xf32>
    %cst_40 = arith.constant dense<0.000000e+00> : vector<1x128xf32>
    %265 = tpu.matmul %263, %141, %cst_40 {dimension_numbers = #tpu.dot_dimension_numbers<[1], [0], [0], [1], [0, 0, 1, 1], [], []>} : vector<1x128xf32>, vector<128x128xf32>, vector<1x128xf32> -> vector<1x128xf32>
    %266 = arith.addf %264, %265 : vector<1x128xf32>
    %267 = arith.mulf %266, %36 : vector<1x128xf32>
    %268 = math.tanh %267 : vector<1x128xf32>
    %269 = arith.mulf %268, %36 : vector<1x128xf32>
    %270 = arith.addf %269, %39 : vector<1x128xf32>
    %271 = vector.extract_strided_slice %270 {offsets = [0, 0], sizes = [1, 32], strides = [1, 1]} : vector<1x128xf32> to vector<1x32xf32>
    %272 = vector.extract_strided_slice %270 {offsets = [0, 32], sizes = [1, 32], strides = [1, 1]} : vector<1x128xf32> to vector<1x32xf32>
    %273 = vector.extract_strided_slice %270 {offsets = [0, 64], sizes = [1, 32], strides = [1, 1]} : vector<1x128xf32> to vector<1x32xf32>
    %274 = vector.extract_strided_slice %270 {offsets = [0, 96], sizes = [1, 32], strides = [1, 1]} : vector<1x128xf32> to vector<1x32xf32>
    %275 = arith.mulf %272, %260 : vector<1x32xf32>
    %276 = arith.mulf %271, %273 : vector<1x32xf32>
    %277 = arith.addf %275, %276 : vector<1x32xf32>
    %278 = math.tanh %277 : vector<1x32xf32>
    %279 = arith.mulf %274, %278 : vector<1x32xf32>
    %280 = tpu.concatenate %279, %144 in 1 : vector<1x32xf32>, vector<1x96xf32> -> vector<1x128xf32>
    %281 = tpu.concatenate %161, %178, %195, %212, %229, %246, %263, %280 in 0 : vector<1x128xf32>, vector<1x128xf32>, vector<1x128xf32>, vector<1x128xf32>, vector<1x128xf32>, vector<1x128xf32>, vector<1x128xf32>, vector<1x128xf32> -> vector<8x128xf32>
    %c0_41 = arith.constant 0 : index
    %c0_42 = arith.constant 0 : index
    %282 = vector.load %arg7[%c0_41, %c0_42] : memref<128x6xf32, #tpu.memory_space<vmem>>, vector<128x6xf32>
    %cst_43 = arith.constant dense<0.000000e+00> : vector<8x6xf32>
    %283 = tpu.matmul %281, %282, %cst_43 {dimension_numbers = #tpu.dot_dimension_numbers<[1], [0], [0], [1], [0, 0, 1, 1], [], []>} : vector<8x128xf32>, vector<128x6xf32>, vector<8x6xf32> -> vector<8x6xf32>
    %c0_44 = arith.constant 0 : index
    %c0_45 = arith.constant 0 : index
    %284 = vector.load %arg8[%c0_44, %c0_45] : memref<1x6xf32, #tpu.memory_space<vmem>>, vector<1x6xf32>
    %285 = vector.broadcast %284 : vector<1x6xf32> to vector<8x6xf32>
    %286 = arith.addf %283, %285 : vector<8x6xf32>
    %cst_46 = arith.constant dense<0xFF800000> : vector<8xf32>
    %287 = vector.multi_reduction <maximumf>, %286, %cst_46 [1] : vector<8x6xf32> to vector<8xf32>
    %288 = vector.shape_cast %287 : vector<8xf32> to vector<8x1xf32>
    %289 = vector.broadcast %288 : vector<8x1xf32> to vector<8x6xf32>
    %290 = arith.subf %286, %289 : vector<8x6xf32>
    %291 = math.exp %290 : vector<8x6xf32>
    %cst_47 = arith.constant dense<0.000000e+00> : vector<8xf32>
    %292 = vector.multi_reduction <add>, %291, %cst_47 [1] : vector<8x6xf32> to vector<8xf32>
    %293 = vector.shape_cast %292 : vector<8xf32> to vector<8x1xf32>
    %294 = math.log %293 : vector<8x1xf32>
    %295 = arith.addf %288, %294 : vector<8x1xf32>
    %296 = vector.broadcast %295 : vector<8x1xf32> to vector<8x6xf32>
    %297 = arith.subf %286, %296 : vector<8x6xf32>
    %c0_48 = arith.constant 0 : index
    %c0_49 = arith.constant 0 : index
    %298 = vector.load %arg9[%c0_48, %c0_49] : memref<8x6xf32, #tpu.memory_space<vmem>>, vector<8x6xf32>
    tpu.vector_store %arg9[%c0_48, %c0_49], %297 {strides = array<i32>} : memref<8x6xf32, #tpu.memory_space<vmem>>, vector<8x6xf32>,
    return
  }
}

</mosaic_0001>

<llo_original>
// kernel: tpu_custom_call.1
$region0: #{tpu_custom_call.1}
  #allocation0 [shape = 'u32[]', space=smem, size = 0x4, offset = 0x4, fixed_abs, tag = 'smem constant byte address 0x4 - core index']
  #allocation1 [shape = 'u32[144,128]{1,0:T(1,128)}', space=vmem, size = 0x12000, scoped, tag = 'internal scratch']
  %s0 = inlined_call_operand.hbm [shape: f32[1,128], index: 0, kind: input, shape index: {}]
  %s1 = inlined_call_operand.hbm [shape: f32[1,128], index: 1, kind: output, shape index: {}]
  %s2 = sld [smem:[#allocation0]]
  $region18: #{tpu_custom_call.1} parent=0
    _
  %s4 = ssub.s32 1, %s2
  %s5 = scalar_select 0, %s4, %s2
  $region1: #{tpu_custom_call.1} parent=0
    #allocation2 [shape = 'u8[512]{0}', space=vmem, size = 0x400, scoped, tag = 'input window, operand 0, single buffered']
    #allocation3 [shape = 's32[1]{0}', space=sflag, size = 0x4, scoped, tag = 'scoped memory for tpu_custom_call.1']
    #allocation4 [shape = 's32[1]{0}', space=sflag, size = 0x4, scoped, tag = 'scoped memory for tpu_custom_call.1']
    #allocation5 [shape = 'u8[512]{0}', space=vmem, size = 0x400, scoped, tag = 'output window, operand 0, single buffered']
    %6 = vsyncpa [#allocation3], 0
    %7 = vsyncpa [#allocation4], 0
    // Predicated region
    $region2: #{tpu_custom_call.1} parent=1 // pred_check
      _
    $region3: #{tpu_custom_call.1} parent=1 // pred_check_branch
      %9 = sbr.rel (0) target = $region5
    $region4: #{tpu_custom_call.1} parent=1 // pred_region
      %s11 = ssub.s32 16, 16
      %12 = vsyncadd [#allocation3], %s11
      %s14 = sshll.u32 [#allocation2], 4
      %s15 = int_to_ptr.vmem [resolvable:$true] %s14
      %17 = dma.hbm_to_vmem [thread:$0]  %s0, 16, %s15, [#allocation3]
    $region5: #{tpu_custom_call.1} parent=1 // pred_fallthru
      _
    // Predicated region
    $region6: #{tpu_custom_call.1} parent=1 // pred_check
      _
    $region7: #{tpu_custom_call.1} parent=1 // pred_check_branch
      %19 = sbr.rel (0) target = $region9
    $region8: #{tpu_custom_call.1} parent=1 // pred_region
      %20 = dma.done [#allocation3], 16
    $region9: #{tpu_custom_call.1} parent=1 // pred_fallthru
      _
    %v21 = vld [vmem:[#allocation2] sm:$0x1]
    %22 = vrot.lane.b32.xlu0 %v21, 32
    %v23 = vpop.permute.xlu0 %22
    %24 = vst [vmem:[#allocation5] sm:$0x1] %v23
    // Predicated region
    $region10: #{tpu_custom_call.1} parent=1 // pred_check
      _
    $region11: #{tpu_custom_call.1} parent=1 // pred_check_branch
      %26 = sbr.rel (0) target = $region13
    $region12: #{tpu_custom_call.1} parent=1 // pred_region
      %s28 = ssub.s32 16, 16
      %29 = vsyncadd [#allocation4], %s28
      %s31 = sshll.u32 [#allocation5], 4
      %s32 = int_to_ptr.vmem [resolvable:$true] %s31
      %34 = dma.vmem_to_hbm [thread:$0]  %s32, 16, %s1, [#allocation4]
    $region13: #{tpu_custom_call.1} parent=1 // pred_fallthru
      _
    // Predicated region
    $region14: #{tpu_custom_call.1} parent=1 // pred_check
      _
    $region15: #{tpu_custom_call.1} parent=1 // pred_check_branch
      %36 = sbr.rel (0) target = $region17
    $region16: #{tpu_custom_call.1} parent=1 // pred_region
      %37 = dma.done [#allocation4], 16
    $region17: #{tpu_custom_call.1} parent=1 // pred_fallthru
      _
    %38 = vsyncpa [#allocation3], 1
    %39 = vsyncpa [#allocation4], 1

// kernel: _forward_impl.1
$region0: #{_forward_impl.1}
  #allocation0 [shape = 'u32[]', space=smem, size = 0x4, offset = 0x4, fixed_abs, tag = 'smem constant byte address 0x4 - core index']
  #allocation1 [shape = 'u32[144,128]{1,0:T(1,128)}', space=vmem, size = 0x12000, scoped, tag = 'internal scratch']
  %s0 = inlined_call_operand.vmem [shape: s32[8,1], index: 0, kind: input, shape index: {}]
  %s1 = inlined_call_operand.vmem [shape: s32[40,1], index: 1, kind: input, shape index: {}]
  %s2 = inlined_call_operand.vmem [shape: f32[24,128], index: 2, kind: input, shape index: {}]
  %s3 = inlined_call_operand.vmem [shape: f32[16,64], index: 3, kind: input, shape index: {}]
  %s4 = inlined_call_operand.vmem [shape: f32[16,64], index: 4, kind: input, shape index: {}]
  %s5 = inlined_call_operand.vmem [shape: f32[16,128], index: 5, kind: input, shape index: {}]
  %s6 = inlined_call_operand.vmem [shape: f32[128,128], index: 6, kind: input, shape index: {}]
  %s7 = inlined_call_operand.vmem [shape: f32[128,6], index: 7, kind: input, shape index: {}]
  %s8 = inlined_call_operand.vmem [shape: f32[1,6], index: 8, kind: input, shape index: {}]
  %s9 = inlined_call_operand.hbm [shape: f32[8,6], index: 9, kind: output, shape index: {}]
  %s10 = sld [smem:[#allocation0]]
  $region46: #{_forward_impl.1} parent=0
    _
  %s12 = ssub.s32 1, %s10
  %s13 = scalar_select 0, %s12, %s10
  $region1: #{_forward_impl.1} parent=0
    #allocation2 [shape = 'u8[4096]{0}', space=vmem, size = 0x1000, scoped, tag = 'output window, operand 0, single buffered']
    #allocation3 [shape = 's32[1]{0}', space=sflag, size = 0x4, scoped, tag = 'scoped memory for _forward_impl.1']
    %14 = vsyncpa [#allocation3], 0
    // Predicated region
    $region2: #{_forward_impl.1} parent=1 // pred_check
      _
    $region3: #{_forward_impl.1} parent=1 // pred_check_branch
      %16 = sbr.rel (0) target = $region5
    $region4: #{_forward_impl.1} parent=1 // pred_region
      _
    $region5: #{_forward_impl.1} parent=1 // pred_fallthru
      _
    // Predicated region
    $region6: #{_forward_impl.1} parent=1 // pred_check
      _
    $region7: #{_forward_impl.1} parent=1 // pred_check_branch
      %18 = sbr.rel (0) target = $region9
    $region8: #{_forward_impl.1} parent=1 // pred_region
      _
    $region9: #{_forward_impl.1} parent=1 // pred_fallthru
      _
    // Predicated region
    $region10: #{_forward_impl.1} parent=1 // pred_check
      _
    $region11: #{_forward_impl.1} parent=1 // pred_check_branch
      %20 = sbr.rel (0) target = $region13
    $region12: #{_forward_impl.1} parent=1 // pred_region
      _
    $region13: #{_forward_impl.1} parent=1 // pred_fallthru
      _
    // Predicated region
    $region14: #{_forward_impl.1} parent=1 // pred_check
      _
    $region15: #{_forward_impl.1} parent=1 // pred_check_branch
      %22 = sbr.rel (0) target = $region17
    $region16: #{_forward_impl.1} parent=1 // pred_region
      _
    $region17: #{_forward_impl.1} parent=1 // pred_fallthru
      _
    // Predicated region
    $region18: #{_forward_impl.1} parent=1 // pred_check
      _
    $region19: #{_forward_impl.1} parent=1 // pred_check_branch
      %24 = sbr.rel (0) target = $region21
    $region20: #{_forward_impl.1} parent=1 // pred_region
      _
    $region21: #{_forward_impl.1} parent=1 // pred_fallthru
      _
    // Predicated region
    $region22: #{_forward_impl.1} parent=1 // pred_check
      _
    $region23: #{_forward_impl.1} parent=1 // pred_check_branch
      %26 = sbr.rel (0) target = $region25
    $region24: #{_forward_impl.1} parent=1 // pred_region
      _
    $region25: #{_forward_impl.1} parent=1 // pred_fallthru
      _
    // Predicated region
    $region26: #{_forward_impl.1} parent=1 // pred_check
      _
    $region27: #{_forward_impl.1} parent=1 // pred_check_branch
      %28 = sbr.rel (0) target = $region29
    $region28: #{_forward_impl.1} parent=1 // pred_region
      _
    $region29: #{_forward_impl.1} parent=1 // pred_fallthru
      _
    // Predicated region
    $region30: #{_forward_impl.1} parent=1 // pred_check
      _
    $region31: #{_forward_impl.1} parent=1 // pred_check_branch
      %30 = sbr.rel (0) target = $region33
    $region32: #{_forward_impl.1} parent=1 // pred_region
      _
    $region33: #{_forward_impl.1} parent=1 // pred_fallthru
      _
    // Predicated region
    $region34: #{_forward_impl.1} parent=1 // pred_check
      _
    $region35: #{_forward_impl.1} parent=1 // pred_check_branch
      %32 = sbr.rel (0) target = $region37
    $region36: #{_forward_impl.1} parent=1 // pred_region
      _
    $region37: #{_forward_impl.1} parent=1 // pred_fallthru
      _
    %v33 = vld [vmem:[%s0] sm:$0xff]
    %v34 = vlaneseq
    %v35 = vand.u32 %v34, 127
    %36 = vset.pattern.permute.xlu0 0
    %37 = vperm.xlu0 %36, %v33
    %v38 = vpop.permute.xlu0 %37
    %vm39 = vcmp.eq.s32.totalorder %v38, %v35
    %v40 = vsel %vm39, 1, 0
    %v41 = vcvt.s32.f32 %v40
    %v42 = vld [vmem:[%s1] sm:$0xff]
    %v43 = vld [vmem:[%s1 + $0x8] sm:$0xff]
    %v44 = vld [vmem:[%s1 + $0x10] sm:$0xff]
    %v45 = vld [vmem:[%s1 + $0x18] sm:$0xff]
    %v46 = vld [vmem:[%s1 + $0x20] sm:$0xff]
    %47 = vset.pattern.permute.xlu0 0
    %48 = vperm.xlu0 %47, %v42
    %v49 = vpop.permute.xlu0 %48
    %50 = vset.pattern.permute.xlu0 0
    %51 = vperm.xlu0 %50, %v43
    %v52 = vpop.permute.xlu0 %51
    %53 = vset.pattern.permute.xlu0 0
    %54 = vperm.xlu0 %53, %v44
    %v55 = vpop.permute.xlu0 %54
    %56 = vset.pattern.permute.xlu0 0
    %57 = vperm.xlu0 %56, %v45
    %v58 = vpop.permute.xlu0 %57
    %59 = vset.pattern.permute.xlu0 0
    %60 = vperm.xlu0 %59, %v46
    %v61 = vpop.permute.xlu0 %60
    %vm62 = vcmp.eq.s32.totalorder %v49, %v35
    %vm63 = vcmp.eq.s32.totalorder %v52, %v35
    %vm64 = vcmp.eq.s32.totalorder %v55, %v35
    %vm65 = vcmp.eq.s32.totalorder %v58, %v35
    %vm66 = vcmp.eq.s32.totalorder %v61, %v35
    %v67 = vsel %vm62, 1, 0
    %v68 = vsel %vm63, 1, 0
    %v69 = vsel %vm64, 1, 0
    %v70 = vsel %vm65, 1, 0
    %v71 = vsel %vm66, 1, 0
    %v72 = vcvt.s32.f32 %v67
    %v73 = vcvt.s32.f32 %v68
    %v74 = vcvt.s32.f32 %v69
    %v75 = vcvt.s32.f32 %v70
    %v76 = vcvt.s32.f32 %v71
    %v77 = vld [vmem:[%s3] sm:$0xff]
    %v78 = vld [vmem:[%s3 + $0x8] sm:$0xff]
    %vm79 = vcmask 130048
    %v81 = vsel %vm79, %v72, 0
    %v84 = vsel %vm79, %v73, 0
    %v87 = vsel %vm79, %v74, 0
    %v90 = vsel %vm79, %v75, 0
    %v93 = vsel %vm79, %v76, 0
    %95 = vmatprep.subr.mxu0 0.0
    %96 = vmatpush1.msra.mxu0 %v77
    %97 = vmatprep.subr.mxu0 0.0
    %98 = vmatpush1.msra.mxu0 %v78
    %99 = vmatprep.subr.mxu0 0.0
    %100 = vmatpush1.msra.mxu0 0.0
    %101 = vmatprep.subr.mxu0 0.0
    %102 = vmatpush1.msra.mxu0 0.0
    %103 = vmatprep.subr.mxu0 0.0
    %104 = vmatpush1.msra.mxu0 0.0
    %105 = vmatprep.subr.mxu0 0.0
    %106 = vmatpush1.msra.mxu0 0.0
    %107 = vmatprep.subr.mxu0 0.0
    %108 = vmatpush1.msra.mxu0 0.0
    %109 = vmatprep.subr.mxu0 0.0
    %110 = vmatpush1.msra.mxu0 0.0
    %111 = vmatprep.subr.mxu0 0.0
    %112 = vmatpush1.msra.mxu0 0.0
    %113 = vmatprep.subr.mxu0 0.0
    %114 = vmatpush1.msra.mxu0 0.0
    %115 = vmatprep.subr.mxu0 0.0
    %116 = vmatpush1.msra.mxu0 0.0
    %117 = vmatprep.subr.mxu0 0.0
    %118 = vmatpush1.msra.mxu0 0.0
    %119 = vmatprep.subr.mxu0 0.0
    %120 = vmatpush1.msra.mxu0 0.0
    %121 = vmatprep.subr.mxu0 0.0
    %122 = vmatpush1.msra.mxu0 0.0
    %123 = vmatprep.subr.mxu0 0.0
    %124 = vmatpush1.msra.mxu0 0.0
    %125 = vmatprep.subr.mxu0 0.0
    %126 = vmatpush1.msra.mxu0 0.0
    %127 = vmatprep.subr.mxu0 0.0
    %128 = vmatpush1.msra.mxu0 0.0
    %129 = vmatprep.subr.mxu0 0.0
    %130 = vmatpush1.msra.mxu0 0.0
    %131 = vmatprep.subr.mxu0 0.0
    %132 = vmatpush1.msra.mxu0 0.0
    %133 = vmatprep.subr.mxu0 0.0
    %134 = vmatpush1.msra.mxu0 0.0
    %135 = vmatprep.subr.mxu0 0.0
    %136 = vmatpush1.msra.mxu0 0.0
    %137 = vmatprep.subr.mxu0 0.0
    %138 = vmatpush1.msra.mxu0 0.0
    %139 = vmatprep.subr.mxu0 0.0
    %140 = vmatpush1.msra.mxu0 0.0
    %141 = vmatprep.subr.mxu0 0.0
    %142 = vmatpush1.msra.mxu0 0.0
    %143 = vmatprep.subr.mxu0 0.0
    %144 = vmatpush1.msra.mxu0 0.0
    %145 = vmatprep.subr.mxu0 0.0
    %146 = vmatpush1.msra.mxu0 0.0
    %147 = vmatprep.subr.mxu0 0.0
    %148 = vmatpush1.msra.mxu0 0.0
    %149 = vmatprep.subr.mxu0 0.0
    %150 = vmatpush1.msra.mxu0 0.0
    %151 = vmatprep.subr.mxu0 0.0
    %152 = vmatpush1.msra.mxu0 0.0
    %153 = vmatprep.subr.mxu0 0.0
    %154 = vmatpush1.msra.mxu0 0.0
    %155 = vmatprep.subr.mxu0 0.0
    %156 = vmatpush1.msra.mxu0 0.0
    %157 = vmatprep.subr.mxu0 0.0
    %158 = vmatpush1.msra.mxu0 0.0
    %159 = vmatprep.mubr.f32.mxu0 0.0
    %160 = vmatmul.mubr.f32.gmra.mrb[0].mxu0 %v81
    %v161 = vpop.f32.mrb[0].mxu0
    %v162 = vadd.f32 0.0, %v161
    %v163 = vpop.f32.mrb[0].mxu0
    %164 = vmatprep.mubr.f32.mxu0 0.0
    %165 = vmatmul.mubr.f32.gmra.mrb[0].mxu0 %v84
    %v166 = vpop.f32.mrb[0].mxu0
    %v167 = vadd.f32 0.0, %v166
    %v168 = vpop.f32.mrb[0].mxu0
    %169 = vmatprep.mubr.f32.mxu0 0.0
    %170 = vmatmul.mubr.f32.gmra.mrb[0].mxu0 %v87
    %v171 = vpop.f32.mrb[0].mxu0
    %v172 = vadd.f32 0.0, %v171
    %v173 = vpop.f32.mrb[0].mxu0
    %174 = vmatprep.mubr.f32.mxu0 0.0
    %175 = vmatmul.mubr.f32.gmra.mrb[0].mxu0 %v90
    %v176 = vpop.f32.mrb[0].mxu0
    %v177 = vadd.f32 0.0, %v176
    %v178 = vpop.f32.mrb[0].mxu0
    %179 = vmatprep.mubr.f32.mxu0 0.0
    %180 = vmatmul.mubr.f32.gmra.mrb[0].mxu0 %v93
    %v181 = vpop.f32.mrb[0].mxu0
    %v182 = vadd.f32 0.0, %v181
    %v183 = vpop.f32.mrb[0].mxu0
    %184 = vdwg.mxu0
    %v185 = vld [vmem:[%s2] sm:$0xff]
    %v186 = vld [vmem:[%s2 + $0x8] sm:$0xff]
    %v187 = vld [vmem:[%s2 + $0x10] sm:$0xff]
    %vm188 = vcmp.ge.s32.totalorder %v35, 32
    %vm189 = vcmp.lt.s32.totalorder %v35, 48
    %vm190 = vmand %vm188, %vm189
    %v191 = vsel %vm190, 1.0, 0.5
    %v192 = vsel %vm190, 0.0, 0.5
    %vm193 = vcmp.ge.s32.totalorder %v35, 64
    %vm194 = vcmp.lt.s32.totalorder %v35, 96
    %vm195 = vmand %vm193, %vm194
    %v196 = vsel %vm195, 1.0, 0.5
    %v197 = vsel %vm195, 0.0, 0.5
    %v198 = vld [vmem:[%s4] sm:$0xff]
    %v199 = vld [vmem:[%s4 + $0x8] sm:$0xff]
    %v201 = vsel %vm79, 0.0, 0
    %203 = vmatprep.subr.mxu0 0.0
    %204 = vmatpush1.msra.mxu0 %v198
    %205 = vmatprep.subr.mxu0 0.0
    %206 = vmatpush1.msra.mxu0 %v199
    %207 = vmatprep.subr.mxu0 0.0
    %208 = vmatpush1.msra.mxu0 0.0
    %209 = vmatprep.subr.mxu0 0.0
    %210 = vmatpush1.msra.mxu0 0.0
    %211 = vmatprep.subr.mxu0 0.0
    %212 = vmatpush1.msra.mxu0 0.0
    %213 = vmatprep.subr.mxu0 0.0
    %214 = vmatpush1.msra.mxu0 0.0
    %215 = vmatprep.subr.mxu0 0.0
    %216 = vmatpush1.msra.mxu0 0.0
    %217 = vmatprep.subr.mxu0 0.0
    %218 = vmatpush1.msra.mxu0 0.0
    %219 = vmatprep.subr.mxu0 0.0
    %220 = vmatpush1.msra.mxu0 0.0
    %221 = vmatprep.subr.mxu0 0.0
    %222 = vmatpush1.msra.mxu0 0.0
    %223 = vmatprep.subr.mxu0 0.0
    %224 = vmatpush1.msra.mxu0 0.0
    %225 = vmatprep.subr.mxu0 0.0
    %226 = vmatpush1.msra.mxu0 0.0
    %227 = vmatprep.subr.mxu0 0.0
    %228 = vmatpush1.msra.mxu0 0.0
    %229 = vmatprep.subr.mxu0 0.0
    %230 = vmatpush1.msra.mxu0 0.0
    %231 = vmatprep.subr.mxu0 0.0
    %232 = vmatpush1.msra.mxu0 0.0
    %233 = vmatprep.subr.mxu0 0.0
    %234 = vmatpush1.msra.mxu0 0.0
    %235 = vmatprep.subr.mxu0 0.0
    %236 = vmatpush1.msra.mxu0 0.0
    %237 = vmatprep.subr.mxu0 0.0
    %238 = vmatpush1.msra.mxu0 0.0
    %239 = vmatprep.subr.mxu0 0.0
    %240 = vmatpush1.msra.mxu0 0.0
    %241 = vmatprep.subr.mxu0 0.0
    %242 = vmatpush1.msra.mxu0 0.0
    %243 = vmatprep.subr.mxu0 0.0
    %244 = vmatpush1.msra.mxu0 0.0
    %245 = vmatprep.subr.mxu0 0.0
    %246 = vmatpush1.msra.mxu0 0.0
    %247 = vmatprep.subr.mxu0 0.0
    %248 = vmatpush1.msra.mxu0 0.0
    %249 = vmatprep.subr.mxu0 0.0
    %250 = vmatpush1.msra.mxu0 0.0
    %251 = vmatprep.subr.mxu0 0.0
    %252 = vmatpush1.msra.mxu0 0.0
    %253 = vmatprep.subr.mxu0 0.0
    %254 = vmatpush1.msra.mxu0 0.0
    %255 = vmatprep.subr.mxu0 0.0
    %256 = vmatpush1.msra.mxu0 0.0
    %257 = vmatprep.subr.mxu0 0.0
    %258 = vmatpush1.msra.mxu0 0.0
    %259 = vmatprep.subr.mxu0 0.0
    %260 = vmatpush1.msra.mxu0 0.0
    %261 = vmatprep.subr.mxu0 0.0
    %262 = vmatpush1.msra.mxu0 0.0
    %263 = vmatprep.subr.mxu0 0.0
    %264 = vmatpush1.msra.mxu0 0.0
    %265 = vmatprep.subr.mxu0 0.0
    %266 = vmatpush1.msra.mxu0 0.0
    %267 = vmatprep.mubr.f32.mxu0 0.0
    %268 = vmatmul.mubr.f32.gmra.mrb[0].mxu0 %v201
    %v269 = vpop.f32.mrb[0].mxu0
    %v270 = vadd.f32 0.0, %v269
    %v271 = vpop.f32.mrb[0].mxu0
    %272 = vdwg.mxu0
    %v273 = vadd.f32 %v162, %v270
    %v274 = vmul.f32 %v273, %v191
    %v275 = vtanh.pop %v274
    %v276 = vmul.f32 %v275, %v191
    %v277 = vadd.f32 %v276, %v192
    %v278 = vmul.f32 %v277, 0.0
    %280 = vrot.lane.b32.xlu0 %v277, 96
    %v281 = vpop.permute.xlu0 %280
    %v283 = vmul.f32 %v277, %v281
    %285 = vrot.lane.b32.xlu0 %v283, 16
    %v286 = vpop.permute.xlu0 %285
    %v288 = vadd.f32 %v278, %v286
    %v289 = vtanh.pop %v288
    %291 = vrot.lane.b32.xlu0 %v289, 32
    %v292 = vpop.permute.xlu0 %291
    %v294 = vmul.f32 %v277, %v292
    %296 = vrot.lane.b32.xlu0 %v294, 80
    %v297 = vpop.permute.xlu0 %296
    %v298 = vsel %vm79, %v297, 0
    %300 = vmatprep.subr.mxu0 0.0
    %301 = vmatpush1.msra.mxu0 %v198
    %302 = vmatprep.subr.mxu0 0.0
    %303 = vmatpush1.msra.mxu0 %v199
    %304 = vmatprep.subr.mxu0 0.0
    %305 = vmatpush1.msra.mxu0 0.0
    %306 = vmatprep.subr.mxu0 0.0
    %307 = vmatpush1.msra.mxu0 0.0
    %308 = vmatprep.subr.mxu0 0.0
    %309 = vmatpush1.msra.mxu0 0.0
    %310 = vmatprep.subr.mxu0 0.0
    %311 = vmatpush1.msra.mxu0 0.0
    %312 = vmatprep.subr.mxu0 0.0
    %313 = vmatpush1.msra.mxu0 0.0
    %314 = vmatprep.subr.mxu0 0.0
    %315 = vmatpush1.msra.mxu0 0.0
    %316 = vmatprep.subr.mxu0 0.0
    %317 = vmatpush1.msra.mxu0 0.0
    %318 = vmatprep.subr.mxu0 0.0
    %319 = vmatpush1.msra.mxu0 0.0
    %320 = vmatprep.subr.mxu0 0.0
    %321 = vmatpush1.msra.mxu0 0.0
    %322 = vmatprep.subr.mxu0 0.0
    %323 = vmatpush1.msra.mxu0 0.0
    %324 = vmatprep.subr.mxu0 0.0
    %325 = vmatpush1.msra.mxu0 0.0
    %326 = vmatprep.subr.mxu0 0.0
    %327 = vmatpush1.msra.mxu0 0.0
    %328 = vmatprep.subr.mxu0 0.0
    %329 = vmatpush1.msra.mxu0 0.0
    %330 = vmatprep.subr.mxu0 0.0
    %331 = vmatpush1.msra.mxu0 0.0
    %332 = vmatprep.subr.mxu0 0.0
    %333 = vmatpush1.msra.mxu0 0.0
    %334 = vmatprep.subr.mxu0 0.0
    %335 = vmatpush1.msra.mxu0 0.0
    %336 = vmatprep.subr.mxu0 0.0
    %337 = vmatpush1.msra.mxu0 0.0
    %338 = vmatprep.subr.mxu0 0.0
    %339 = vmatpush1.msra.mxu0 0.0
    %340 = vmatprep.subr.mxu0 0.0
    %341 = vmatpush1.msra.mxu0 0.0
    %342 = vmatprep.subr.mxu0 0.0
    %343 = vmatpush1.msra.mxu0 0.0
    %344 = vmatprep.subr.mxu0 0.0
    %345 = vmatpush1.msra.mxu0 0.0
    %346 = vmatprep.subr.mxu0 0.0
    %347 = vmatpush1.msra.mxu0 0.0
    %348 = vmatprep.subr.mxu0 0.0
    %349 = vmatpush1.msra.mxu0 0.0
    %350 = vmatprep.subr.mxu0 0.0
    %351 = vmatpush1.msra.mxu0 0.0
    %352 = vmatprep.subr.mxu0 0.0
    %353 = vmatpush1.msra.mxu0 0.0
    %354 = vmatprep.subr.mxu0 0.0
    %355 = vmatpush1.msra.mxu0 0.0
    %356 = vmatprep.subr.mxu0 0.0
    %357 = vmatpush1.msra.mxu0 0.0
    %358 = vmatprep.subr.mxu0 0.0
    %359 = vmatpush1.msra.mxu0 0.0
    %360 = vmatprep.subr.mxu0 0.0
    %361 = vmatpush1.msra.mxu0 0.0
    %362 = vmatprep.subr.mxu0 0.0
    %363 = vmatpush1.msra.mxu0 0.0
    %364 = vmatprep.mubr.f32.mxu0 0.0
    %365 = vmatmul.mubr.f32.gmra.mrb[0].mxu0 %v298
    %v366 = vpop.f32.mrb[0].mxu0
    %v367 = vadd.f32 0.0, %v366
    %v368 = vpop.f32.mrb[0].mxu0
    %369 = vdwg.mxu0
    %v370 = vadd.f32 %v167, %v367
    %v371 = vmul.f32 %v370, %v191
    %v372 = vtanh.pop %v371
    %v373 = vmul.f32 %v372, %v191
    %v374 = vadd.f32 %v373, %v192
    %v375 = vmul.f32 %v374, %v288
    %377 = vrot.lane.b32.xlu0 %v374, 96
    %v378 = vpop.permute.xlu0 %377
    %v380 = vmul.f32 %v374, %v378
    %382 = vrot.lane.b32.xlu0 %v380, 16
    %v383 = vpop.permute.xlu0 %382
    %v385 = vadd.f32 %v375, %v383
    %v386 = vtanh.pop %v385
    %388 = vrot.lane.b32.xlu0 %v386, 32
    %v389 = vpop.permute.xlu0 %388
    %v391 = vmul.f32 %v374, %v389
    %393 = vrot.lane.b32.xlu0 %v391, 80
    %v394 = vpop.permute.xlu0 %393
    %v395 = vsel %vm79, %v394, 0
    %397 = vmatprep.subr.mxu0 0.0
    %398 = vmatpush1.msra.mxu0 %v198
    %399 = vmatprep.subr.mxu0 0.0
    %400 = vmatpush1.msra.mxu0 %v199
    %401 = vmatprep.subr.mxu0 0.0
    %402 = vmatpush1.msra.mxu0 0.0
    %403 = vmatprep.subr.mxu0 0.0
    %404 = vmatpush1.msra.mxu0 0.0
    %405 = vmatprep.subr.mxu0 0.0
    %406 = vmatpush1.msra.mxu0 0.0
    %407 = vmatprep.subr.mxu0 0.0
    %408 = vmatpush1.msra.mxu0 0.0
    %409 = vmatprep.subr.mxu0 0.0
    %410 = vmatpush1.msra.mxu0 0.0
    %411 = vmatprep.subr.mxu0 0.0
    %412 = vmatpush1.msra.mxu0 0.0
    %413 = vmatprep.subr.mxu0 0.0
    %414 = vmatpush1.msra.mxu0 0.0
    %415 = vmatprep.subr.mxu0 0.0
    %416 = vmatpush1.msra.mxu0 0.0
    %417 = vmatprep.subr.mxu0 0.0
    %418 = vmatpush1.msra.mxu0 0.0
    %419 = vmatprep.subr.mxu0 0.0
    %420 = vmatpush1.msra.mxu0 0.0
    %421 = vmatprep.subr.mxu0 0.0
    %422 = vmatpush1.msra.mxu0 0.0
    %423 = vmatprep.subr.mxu0 0.0
    %424 = vmatpush1.msra.mxu0 0.0
    %425 = vmatprep.subr.mxu0 0.0
    %426 = vmatpush1.msra.mxu0 0.0
    %427 = vmatprep.subr.mxu0 0.0
    %428 = vmatpush1.msra.mxu0 0.0
    %429 = vmatprep.subr.mxu0 0.0
    %430 = vmatpush1.msra.mxu0 0.0
    %431 = vmatprep.subr.mxu0 0.0
    %432 = vmatpush1.msra.mxu0 0.0
    %433 = vmatprep.subr.mxu0 0.0
    %434 = vmatpush1.msra.mxu0 0.0
    %435 = vmatprep.subr.mxu0 0.0
    %436 = vmatpush1.msra.mxu0 0.0
    %437 = vmatprep.subr.mxu0 0.0
    %438 = vmatpush1.msra.mxu0 0.0
    %439 = vmatprep.subr.mxu0 0.0
    %440 = vmatpush1.msra.mxu0 0.0
    %441 = vmatprep.subr.mxu0 0.0
    %442 = vmatpush1.msra.mxu0 0.0
    %443 = vmatprep.subr.mxu0 0.0
    %444 = vmatpush1.msra.mxu0 0.0
    %445 = vmatprep.subr.mxu0 0.0
    %446 = vmatpush1.msra.mxu0 0.0
    %447 = vmatprep.subr.mxu0 0.0
    %448 = vmatpush1.msra.mxu0 0.0
    %449 = vmatprep.subr.mxu0 0.0
    %450 = vmatpush1.msra.mxu0 0.0
    %451 = vmatprep.subr.mxu0 0.0
    %452 = vmatpush1.msra.mxu0 0.0
    %453 = vmatprep.subr.mxu0 0.0
    %454 = vmatpush1.msra.mxu0 0.0
    %455 = vmatprep.subr.mxu0 0.0
    %456 = vmatpush1.msra.mxu0 0.0
    %457 = vmatprep.subr.mxu0 0.0
    %458 = vmatpush1.msra.mxu0 0.0
    %459 = vmatprep.subr.mxu0 0.0
    %460 = vmatpush1.msra.mxu0 0.0
    %461 = vmatprep.mubr.f32.mxu0 0.0
    %462 = vmatmul.mubr.f32.gmra.mrb[0].mxu0 %v395
    %v463 = vpop.f32.mrb[0].mxu0
    %v464 = vadd.f32 0.0, %v463
    %v465 = vpop.f32.mrb[0].mxu0
    %466 = vdwg.mxu0
    %v467 = vadd.f32 %v172, %v464
    %v468 = vmul.f32 %v467, %v191
    %v469 = vtanh.pop %v468
    %v470 = vmul.f32 %v469, %v191
    %v471 = vadd.f32 %v470, %v192
    %v472 = vmul.f32 %v471, %v385
    %474 = vrot.lane.b32.xlu0 %v471, 96
    %v475 = vpop.permute.xlu0 %474
    %v477 = vmul.f32 %v471, %v475
    %479 = vrot.lane.b32.xlu0 %v477, 16
    %v480 = vpop.permute.xlu0 %479
    %v482 = vadd.f32 %v472, %v480
    %v483 = vtanh.pop %v482
    %485 = vrot.lane.b32.xlu0 %v483, 32
    %v486 = vpop.permute.xlu0 %485
    %v488 = vmul.f32 %v471, %v486
    %490 = vrot.lane.b32.xlu0 %v488, 80
    %v491 = vpop.permute.xlu0 %490
    %v492 = vsel %vm79, %v491, 0
    %494 = vmatprep.subr.mxu0 0.0
    %495 = vmatpush1.msra.mxu0 %v198
    %496 = vmatprep.subr.mxu0 0.0
    %497 = vmatpush1.msra.mxu0 %v199
    %498 = vmatprep.subr.mxu0 0.0
    %499 = vmatpush1.msra.mxu0 0.0
    %500 = vmatprep.subr.mxu0 0.0
    %501 = vmatpush1.msra.mxu0 0.0
    %502 = vmatprep.subr.mxu0 0.0
    %503 = vmatpush1.msra.mxu0 0.0
    %504 = vmatprep.subr.mxu0 0.0
    %505 = vmatpush1.msra.mxu0 0.0
    %506 = vmatprep.subr.mxu0 0.0
    %507 = vmatpush1.msra.mxu0 0.0
    %508 = vmatprep.subr.mxu0 0.0
    %509 = vmatpush1.msra.mxu0 0.0
    %510 = vmatprep.subr.mxu0 0.0
    %511 = vmatpush1.msra.mxu0 0.0
    %512 = vmatprep.subr.mxu0 0.0
    %513 = vmatpush1.msra.mxu0 0.0
    %514 = vmatprep.subr.mxu0 0.0
    %515 = vmatpush1.msra.mxu0 0.0
    %516 = vmatprep.subr.mxu0 0.0
    %517 = vmatpush1.msra.mxu0 0.0
    %518 = vmatprep.subr.mxu0 0.0
    %519 = vmatpush1.msra.mxu0 0.0
    %520 = vmatprep.subr.mxu0 0.0
    %521 = vmatpush1.msra.mxu0 0.0
    %522 = vmatprep.subr.mxu0 0.0
    %523 = vmatpush1.msra.mxu0 0.0
    %524 = vmatprep.subr.mxu0 0.0
    %525 = vmatpush1.msra.mxu0 0.0
    %526 = vmatprep.subr.mxu0 0.0
    %527 = vmatpush1.msra.mxu0 0.0
    %528 = vmatprep.subr.mxu0 0.0
    %529 = vmatpush1.msra.mxu0 0.0
    %530 = vmatprep.subr.mxu0 0.0
    %531 = vmatpush1.msra.mxu0 0.0
    %532 = vmatprep.subr.mxu0 0.0
    %533 = vmatpush1.msra.mxu0 0.0
    %534 = vmatprep.subr.mxu0 0.0
    %535 = vmatpush1.msra.mxu0 0.0
    %536 = vmatprep.subr.mxu0 0.0
    %537 = vmatpush1.msra.mxu0 0.0
    %538 = vmatprep.subr.mxu0 0.0
    %539 = vmatpush1.msra.mxu0 0.0
    %540 = vmatprep.subr.mxu0 0.0
    %541 = vmatpush1.msra.mxu0 0.0
    %542 = vmatprep.subr.mxu0 0.0
    %543 = vmatpush1.msra.mxu0 0.0
    %544 = vmatprep.subr.mxu0 0.0
    %545 = vmatpush1.msra.mxu0 0.0
    %546 = vmatprep.subr.mxu0 0.0
    %547 = vmatpush1.msra.mxu0 0.0
    %548 = vmatprep.subr.mxu0 0.0
    %549 = vmatpush1.msra.mxu0 0.0
    %550 = vmatprep.subr.mxu0 0.0
    %551 = vmatpush1.msra.mxu0 0.0
    %552 = vmatprep.subr.mxu0 0.0
    %553 = vmatpush1.msra.mxu0 0.0
    %554 = vmatprep.subr.mxu0 0.0
    %555 = vmatpush1.msra.mxu0 0.0
    %556 = vmatprep.subr.mxu0 0.0
    %557 = vmatpush1.msra.mxu0 0.0
    %558 = vmatprep.mubr.f32.mxu0 0.0
    %559 = vmatmul.mubr.f32.gmra.mrb[0].mxu0 %v492
    %v560 = vpop.f32.mrb[0].mxu0
    %v561 = vadd.f32 0.0, %v560
    %v562 = vpop.f32.mrb[0].mxu0
    %563 = vdwg.mxu0
    %v564 = vadd.f32 %v177, %v561
    %v565 = vmul.f32 %v564, %v191
    %v566 = vtanh.pop %v565
    %v567 = vmul.f32 %v566, %v191
    %v568 = vadd.f32 %v567, %v192
    %v569 = vmul.f32 %v568, %v482
    %571 = vrot.lane.b32.xlu0 %v568, 96
    %v572 = vpop.permute.xlu0 %571
    %v574 = vmul.f32 %v568, %v572
    %576 = vrot.lane.b32.xlu0 %v574, 16
    %v577 = vpop.permute.xlu0 %576
    %v579 = vadd.f32 %v569, %v577
    %v580 = vtanh.pop %v579
    %582 = vrot.lane.b32.xlu0 %v580, 32
    %v583 = vpop.permute.xlu0 %582
    %v585 = vmul.f32 %v568, %v583
    %587 = vrot.lane.b32.xlu0 %v585, 80
    %v588 = vpop.permute.xlu0 %587
    %v589 = vsel %vm79, %v588, 0
    %591 = vmatprep.subr.mxu0 0.0
    %592 = vmatpush1.msra.mxu0 %v198
    %593 = vmatprep.subr.mxu0 0.0
    %594 = vmatpush1.msra.mxu0 %v199
    %595 = vmatprep.subr.mxu0 0.0
    %596 = vmatpush1.msra.mxu0 0.0
    %597 = vmatprep.subr.mxu0 0.0
    %598 = vmatpush1.msra.mxu0 0.0
    %599 = vmatprep.subr.mxu0 0.0
    %600 = vmatpush1.msra.mxu0 0.0
    %601 = vmatprep.subr.mxu0 0.0
    %602 = vmatpush1.msra.mxu0 0.0
    %603 = vmatprep.subr.mxu0 0.0
    %604 = vmatpush1.msra.mxu0 0.0
    %605 = vmatprep.subr.mxu0 0.0
    %606 = vmatpush1.msra.mxu0 0.0
    %607 = vmatprep.subr.mxu0 0.0
    %608 = vmatpush1.msra.mxu0 0.0
    %609 = vmatprep.subr.mxu0 0.0
    %610 = vmatpush1.msra.mxu0 0.0
    %611 = vmatprep.subr.mxu0 0.0
    %612 = vmatpush1.msra.mxu0 0.0
    %613 = vmatprep.subr.mxu0 0.0
    %614 = vmatpush1.msra.mxu0 0.0
    %615 = vmatprep.subr.mxu0 0.0
    %616 = vmatpush1.msra.mxu0 0.0
    %617 = vmatprep.subr.mxu0 0.0
    %618 = vmatpush1.msra.mxu0 0.0
    %619 = vmatprep.subr.mxu0 0.0
    %620 = vmatpush1.msra.mxu0 0.0
    %621 = vmatprep.subr.mxu0 0.0
    %622 = vmatpush1.msra.mxu0 0.0
    %623 = vmatprep.subr.mxu0 0.0
    %624 = vmatpush1.msra.mxu0 0.0
    %625 = vmatprep.subr.mxu0 0.0
    %626 = vmatpush1.msra.mxu0 0.0
    %627 = vmatprep.subr.mxu0 0.0
    %628 = vmatpush1.msra.mxu0 0.0
    %629 = vmatprep.subr.mxu0 0.0
    %630 = vmatpush1.msra.mxu0 0.0
    %631 = vmatprep.subr.mxu0 0.0
    %632 = vmatpush1.msra.mxu0 0.0
    %633 = vmatprep.subr.mxu0 0.0
    %634 = vmatpush1.msra.mxu0 0.0
    %635 = vmatprep.subr.mxu0 0.0
    %636 = vmatpush1.msra.mxu0 0.0
    %637 = vmatprep.subr.mxu0 0.0
    %638 = vmatpush1.msra.mxu0 0.0
    %639 = vmatprep.subr.mxu0 0.0
    %640 = vmatpush1.msra.mxu0 0.0
    %641 = vmatprep.subr.mxu0 0.0
    %642 = vmatpush1.msra.mxu0 0.0
    %643 = vmatprep.subr.mxu0 0.0
    %644 = vmatpush1.msra.mxu0 0.0
    %645 = vmatprep.subr.mxu0 0.0
    %646 = vmatpush1.msra.mxu0 0.0
    %647 = vmatprep.subr.mxu0 0.0
    %648 = vmatpush1.msra.mxu0 0.0
    %649 = vmatprep.subr.mxu0 0.0
    %650 = vmatpush1.msra.mxu0 0.0
    %651 = vmatprep.subr.mxu0 0.0
    %652 = vmatpush1.msra.mxu0 0.0
    %653 = vmatprep.subr.mxu0 0.0
    %654 = vmatpush1.msra.mxu0 0.0
    %655 = vmatprep.mubr.f32.mxu0 0.0
    %656 = vmatmul.mubr.f32.gmra.mrb[0].mxu0 %v589
    %v657 = vpop.f32.mrb[0].mxu0
    %v658 = vadd.f32 0.0, %v657
    %v659 = vpop.f32.mrb[0].mxu0
    %660 = vdwg.mxu0
    %v661 = vadd.f32 %v182, %v658
    %v662 = vmul.f32 %v661, %v191
    %v663 = vtanh.pop %v662
    %v664 = vmul.f32 %v663, %v191
    %v665 = vadd.f32 %v664, %v192
    %v666 = vmul.f32 %v665, %v579
    %668 = vrot.lane.b32.xlu0 %v665, 96
    %v669 = vpop.permute.xlu0 %668
    %v671 = vmul.f32 %v665, %v669
    %673 = vrot.lane.b32.xlu0 %v671, 16
    %v674 = vpop.permute.xlu0 %673
    %v676 = vadd.f32 %v666, %v674
    %v677 = vtanh.pop %v676
    %679 = vrot.lane.b32.xlu0 %v677, 32
    %v680 = vpop.permute.xlu0 %679
    %v682 = vmul.f32 %v665, %v680
    %v683 = vld [vmem:[%s5] sm:$0xff]
    %v684 = vld [vmem:[%s5 + $0x8] sm:$0xff]
    %686 = vrot.lane.b32.xlu0 %v682, 80
    %v687 = vpop.permute.xlu0 %686
    %v688 = vsel %vm79, %v687, 0
    %690 = vmatprep.subr.mxu0 0.0
    %691 = vmatpush1.msra.mxu0 %v683
    %692 = vmatprep.subr.mxu0 0.0
    %693 = vmatpush1.msra.mxu0 %v684
    %694 = vmatprep.subr.mxu0 0.0
    %695 = vmatpush1.msra.mxu0 0.0
    %696 = vmatprep.subr.mxu0 0.0
    %697 = vmatpush1.msra.mxu0 0.0
    %698 = vmatprep.subr.mxu0 0.0
    %699 = vmatpush1.msra.mxu0 0.0
    %700 = vmatprep.subr.mxu0 0.0
    %701 = vmatpush1.msra.mxu0 0.0
    %702 = vmatprep.subr.mxu0 0.0
    %703 = vmatpush1.msra.mxu0 0.0
    %704 = vmatprep.subr.mxu0 0.0
    %705 = vmatpush1.msra.mxu0 0.0
    %706 = vmatprep.subr.mxu0 0.0
    %707 = vmatpush1.msra.mxu0 0.0
    %708 = vmatprep.subr.mxu0 0.0
    %709 = vmatpush1.msra.mxu0 0.0
    %710 = vmatprep.subr.mxu0 0.0
    %711 = vmatpush1.msra.mxu0 0.0
    %712 = vmatprep.subr.mxu0 0.0
    %713 = vmatpush1.msra.mxu0 0.0
    %714 = vmatprep.subr.mxu0 0.0
    %715 = vmatpush1.msra.mxu0 0.0
    %716 = vmatprep.subr.mxu0 0.0
    %717 = vmatpush1.msra.mxu0 0.0
    %718 = vmatprep.subr.mxu0 0.0
    %719 = vmatpush1.msra.mxu0 0.0
    %720 = vmatprep.subr.mxu0 0.0
    %721 = vmatpush1.msra.mxu0 0.0
    %722 = vmatprep.subr.mxu0 0.0
    %723 = vmatpush1.msra.mxu0 0.0
    %724 = vmatprep.subr.mxu0 0.0
    %725 = vmatpush1.msra.mxu0 0.0
    %726 = vmatprep.subr.mxu0 0.0
    %727 = vmatpush1.msra.mxu0 0.0
    %728 = vmatprep.subr.mxu0 0.0
    %729 = vmatpush1.msra.mxu0 0.0
    %730 = vmatprep.subr.mxu0 0.0
    %731 = vmatpush1.msra.mxu0 0.0
    %732 = vmatprep.subr.mxu0 0.0
    %733 = vmatpush1.msra.mxu0 0.0
    %734 = vmatprep.subr.mxu0 0.0
    %735 = vmatpush1.msra.mxu0 0.0
    %736 = vmatprep.subr.mxu0 0.0
    %737 = vmatpush1.msra.mxu0 0.0
    %738 = vmatprep.subr.mxu0 0.0
    %739 = vmatpush1.msra.mxu0 0.0
    %740 = vmatprep.subr.mxu0 0.0
    %741 = vmatpush1.msra.mxu0 0.0
    %742 = vmatprep.subr.mxu0 0.0
    %743 = vmatpush1.msra.mxu0 0.0
    %744 = vmatprep.subr.mxu0 0.0
    %745 = vmatpush1.msra.mxu0 0.0
    %746 = vmatprep.subr.mxu0 0.0
    %747 = vmatpush1.msra.mxu0 0.0
    %748 = vmatprep.subr.mxu0 0.0
    %749 = vmatpush1.msra.mxu0 0.0
    %750 = vmatprep.subr.mxu0 0.0
    %751 = vmatpush1.msra.mxu0 0.0
    %752 = vmatprep.subr.mxu0 0.0
    %753 = vmatpush1.msra.mxu0 0.0
    %754 = vmatprep.mubr.f32.mxu0 0.0
    %755 = vmatmul.mubr.f32.gmra.mrb[0].mxu0 %v688
    %v756 = vpop.f32.mrb[0].mxu0
    %v757 = vadd.f32 0.0, %v756
    %v758 = vpop.f32.mrb[0].mxu0
    %759 = vdwg.mxu0
    %vm760 = vcmask 195584
    %v762 = vsel %vm760, %v41, 0
    %764 = vmatprep.subr.mxu0 0.0
    %765 = vmatpush1.msra.mxu0 %v185
    %766 = vmatprep.subr.mxu0 0.0
    %767 = vmatpush1.msra.mxu0 %v186
    %768 = vmatprep.subr.mxu0 0.0
    %769 = vmatpush1.msra.mxu0 %v187
    %770 = vmatprep.subr.mxu0 0.0
    %771 = vmatpush1.msra.mxu0 0.0
    %772 = vmatprep.subr.mxu0 0.0
    %773 = vmatpush1.msra.mxu0 0.0
    %774 = vmatprep.subr.mxu0 0.0
    %775 = vmatpush1.msra.mxu0 0.0
    %776 = vmatprep.subr.mxu0 0.0
    %777 = vmatpush1.msra.mxu0 0.0
    %778 = vmatprep.subr.mxu0 0.0
    %779 = vmatpush1.msra.mxu0 0.0
    %780 = vmatprep.subr.mxu0 0.0
    %781 = vmatpush1.msra.mxu0 0.0
    %782 = vmatprep.subr.mxu0 0.0
    %783 = vmatpush1.msra.mxu0 0.0
    %784 = vmatprep.subr.mxu0 0.0
    %785 = vmatpush1.msra.mxu0 0.0
    %786 = vmatprep.subr.mxu0 0.0
    %787 = vmatpush1.msra.mxu0 0.0
    %788 = vmatprep.subr.mxu0 0.0
    %789 = vmatpush1.msra.mxu0 0.0
    %790 = vmatprep.subr.mxu0 0.0
    %791 = vmatpush1.msra.mxu0 0.0
    %792 = vmatprep.subr.mxu0 0.0
    %793 = vmatpush1.msra.mxu0 0.0
    %794 = vmatprep.subr.mxu0 0.0
    %795 = vmatpush1.msra.mxu0 0.0
    %796 = vmatprep.subr.mxu0 0.0
    %797 = vmatpush1.msra.mxu0 0.0
    %798 = vmatprep.subr.mxu0 0.0
    %799 = vmatpush1.msra.mxu0 0.0
    %800 = vmatprep.subr.mxu0 0.0
    %801 = vmatpush1.msra.mxu0 0.0
    %802 = vmatprep.subr.mxu0 0.0
    %803 = vmatpush1.msra.mxu0 0.0
    %804 = vmatprep.subr.mxu0 0.0
    %805 = vmatpush1.msra.mxu0 0.0
    %806 = vmatprep.subr.mxu0 0.0
    %807 = vmatpush1.msra.mxu0 0.0
    %808 = vmatprep.subr.mxu0 0.0
    %809 = vmatpush1.msra.mxu0 0.0
    %810 = vmatprep.subr.mxu0 0.0
    %811 = vmatpush1.msra.mxu0 0.0
    %812 = vmatprep.subr.mxu0 0.0
    %813 = vmatpush1.msra.mxu0 0.0
    %814 = vmatprep.subr.mxu0 0.0
    %815 = vmatpush1.msra.mxu0 0.0
    %816 = vmatprep.subr.mxu0 0.0
    %817 = vmatpush1.msra.mxu0 0.0
    %818 = vmatprep.subr.mxu0 0.0
    %819 = vmatpush1.msra.mxu0 0.0
    %820 = vmatprep.subr.mxu0 0.0
    %821 = vmatpush1.msra.mxu0 0.0
    %822 = vmatprep.subr.mxu0 0.0
    %823 = vmatpush1.msra.mxu0 0.0
    %824 = vmatprep.subr.mxu0 0.0
    %825 = vmatpush1.msra.mxu0 0.0
    %826 = vmatprep.subr.mxu0 0.0
    %827 = vmatpush1.msra.mxu0 0.0
    %828 = vmatprep.mubr.f32.mxu0 0.0
    %829 = vmatmul.mubr.f32.gmra.mrb[0].mxu0 %v762
    %v830 = vpop.f32.mrb[0].mxu0
    %v831 = vadd.f32 %v757, %v830
    %v832 = vpop.f32.mrb[0].mxu0
    %833 = vdwg.mxu0
    %v834 = vld [vmem:[%s6] sm:$0xff]
    %v835 = vld [vmem:[%s6 + $0x8] sm:$0xff]
    %v836 = vld [vmem:[%s6 + $0x10] sm:$0xff]
    %v837 = vld [vmem:[%s6 + $0x18] sm:$0xff]
    %v838 = vld [vmem:[%s6 + $0x20] sm:$0xff]
    %v839 = vld [vmem:[%s6 + $0x28] sm:$0xff]
    %v840 = vld [vmem:[%s6 + $0x30] sm:$0xff]
    %v841 = vld [vmem:[%s6 + $0x38] sm:$0xff]
    %v842 = vld [vmem:[%s6 + $0x40] sm:$0xff]
    %v843 = vld [vmem:[%s6 + $0x48] sm:$0xff]
    %v844 = vld [vmem:[%s6 + $0x50] sm:$0xff]
    %v845 = vld [vmem:[%s6 + $0x58] sm:$0xff]
    %v846 = vld [vmem:[%s6 + $0x60] sm:$0xff]
    %v847 = vld [vmem:[%s6 + $0x68] sm:$0xff]
    %v848 = vld [vmem:[%s6 + $0x70] sm:$0xff]
    %v849 = vld [vmem:[%s6 + $0x78] sm:$0xff]
    %850 = vmatprep.subr.mxu0 0.0
    %851 = vmatpush1.msra.mxu0 %v834
    %852 = vmatprep.subr.mxu0 0.0
    %853 = vmatpush1.msra.mxu0 %v835
    %854 = vmatprep.subr.mxu0 0.0
    %855 = vmatpush1.msra.mxu0 %v836
    %856 = vmatprep.subr.mxu0 0.0
    %857 = vmatpush1.msra.mxu0 %v837
    %858 = vmatprep.subr.mxu0 0.0
    %859 = vmatpush1.msra.mxu0 %v838
    %860 = vmatprep.subr.mxu0 0.0
    %861 = vmatpush1.msra.mxu0 %v839
    %862 = vmatprep.subr.mxu0 0.0
    %863 = vmatpush1.msra.mxu0 %v840
    %864 = vmatprep.subr.mxu0 0.0
    %865 = vmatpush1.msra.mxu0 %v841
    %866 = vmatprep.subr.mxu0 0.0
    %867 = vmatpush1.msra.mxu0 %v842
    %868 = vmatprep.subr.mxu0 0.0
    %869 = vmatpush1.msra.mxu0 %v843
    %870 = vmatprep.subr.mxu0 0.0
    %871 = vmatpush1.msra.mxu0 %v844
    %872 = vmatprep.subr.mxu0 0.0
    %873 = vmatpush1.msra.mxu0 %v845
    %874 = vmatprep.subr.mxu0 0.0
    %875 = vmatpush1.msra.mxu0 %v846
    %876 = vmatprep.subr.mxu0 0.0
    %877 = vmatpush1.msra.mxu0 %v847
    %878 = vmatprep.subr.mxu0 0.0
    %879 = vmatpush1.msra.mxu0 %v848
    %880 = vmatprep.subr.mxu0 0.0
    %881 = vmatpush1.msra.mxu0 %v849
    %882 = vmatprep.subr.mxu0 0.0
    %883 = vmatpush1.msra.mxu0 0.0
    %884 = vmatprep.subr.mxu0 0.0
    %885 = vmatpush1.msra.mxu0 0.0
    %886 = vmatprep.subr.mxu0 0.0
    %887 = vmatpush1.msra.mxu0 0.0
    %888 = vmatprep.subr.mxu0 0.0
    %889 = vmatpush1.msra.mxu0 0.0
    %890 = vmatprep.subr.mxu0 0.0
    %891 = vmatpush1.msra.mxu0 0.0
    %892 = vmatprep.subr.mxu0 0.0
    %893 = vmatpush1.msra.mxu0 0.0
    %894 = vmatprep.subr.mxu0 0.0
    %895 = vmatpush1.msra.mxu0 0.0
    %896 = vmatprep.subr.mxu0 0.0
    %897 = vmatpush1.msra.mxu0 0.0
    %898 = vmatprep.subr.mxu0 0.0
    %899 = vmatpush1.msra.mxu0 0.0
    %900 = vmatprep.subr.mxu0 0.0
    %901 = vmatpush1.msra.mxu0 0.0
    %902 = vmatprep.subr.mxu0 0.0
    %903 = vmatpush1.msra.mxu0 0.0
    %904 = vmatprep.subr.mxu0 0.0
    %905 = vmatpush1.msra.mxu0 0.0
    %906 = vmatprep.subr.mxu0 0.0
    %907 = vmatpush1.msra.mxu0 0.0
    %908 = vmatprep.subr.mxu0 0.0
    %909 = vmatpush1.msra.mxu0 0.0
    %910 = vmatprep.subr.mxu0 0.0
    %911 = vmatpush1.msra.mxu0 0.0
    %912 = vmatprep.subr.mxu0 0.0
    %913 = vmatpush1.msra.mxu0 0.0
    %914 = vmatprep.mubr.f32.mxu0 0.0
    %915 = vmatmul.mubr.f32.gmra.mrb[0].mxu0 0.0
    %v916 = vpop.f32.mrb[0].mxu0
    %v917 = vadd.f32 0.0, %v916
    %v918 = vpop.f32.mrb[0].mxu0
    %919 = vdwg.mxu0
    %v920 = vadd.f32 %v831, %v917
    %v921 = vmul.f32 %v920, %v196
    %v922 = vtanh.pop %v921
    %v923 = vmul.f32 %v922, %v196
    %v924 = vadd.f32 %v923, %v197
    %v925 = vmul.f32 %v924, 0.0
    %927 = vrot.lane.b32.xlu0 %v924, 64
    %v928 = vpop.permute.xlu0 %927
    %v930 = vmul.f32 %v924, %v928
    %932 = vrot.lane.b32.xlu0 %v930, 32
    %v933 = vpop.permute.xlu0 %932
    %v935 = vadd.f32 %v925, %v933
    %v936 = vtanh.pop %v935
    %938 = vrot.lane.b32.xlu0 %v936, 64
    %v939 = vpop.permute.xlu0 %938
    %v941 = vmul.f32 %v924, %v939
    %943 = vrot.lane.b32.xlu0 %v941, 32
    %v944 = vpop.permute.xlu0 %943
    %vm946 = vcmask 261120
    %v947 = vsel %vm946, %v944, 0.0
    %948 = vmatprep.subr.mxu0 0.0
    %949 = vmatpush1.msra.mxu0 %v834
    %950 = vmatprep.subr.mxu0 0.0
    %951 = vmatpush1.msra.mxu0 %v835
    %952 = vmatprep.subr.mxu0 0.0
    %953 = vmatpush1.msra.mxu0 %v836
    %954 = vmatprep.subr.mxu0 0.0
    %955 = vmatpush1.msra.mxu0 %v837
    %956 = vmatprep.subr.mxu0 0.0
    %957 = vmatpush1.msra.mxu0 %v838
    %958 = vmatprep.subr.mxu0 0.0
    %959 = vmatpush1.msra.mxu0 %v839
    %960 = vmatprep.subr.mxu0 0.0
    %961 = vmatpush1.msra.mxu0 %v840
    %962 = vmatprep.subr.mxu0 0.0
    %963 = vmatpush1.msra.mxu0 %v841
    %964 = vmatprep.subr.mxu0 0.0
    %965 = vmatpush1.msra.mxu0 %v842
    %966 = vmatprep.subr.mxu0 0.0
    %967 = vmatpush1.msra.mxu0 %v843
    %968 = vmatprep.subr.mxu0 0.0
    %969 = vmatpush1.msra.mxu0 %v844
    %970 = vmatprep.subr.mxu0 0.0
    %971 = vmatpush1.msra.mxu0 %v845
    %972 = vmatprep.subr.mxu0 0.0
    %973 = vmatpush1.msra.mxu0 %v846
    %974 = vmatprep.subr.mxu0 0.0
    %975 = vmatpush1.msra.mxu0 %v847
    %976 = vmatprep.subr.mxu0 0.0
    %977 = vmatpush1.msra.mxu0 %v848
    %978 = vmatprep.subr.mxu0 0.0
    %979 = vmatpush1.msra.mxu0 %v849
    %980 = vmatprep.subr.mxu0 0.0
    %981 = vmatpush1.msra.mxu0 0.0
    %982 = vmatprep.subr.mxu0 0.0
    %983 = vmatpush1.msra.mxu0 0.0
    %984 = vmatprep.subr.mxu0 0.0
    %985 = vmatpush1.msra.mxu0 0.0
    %986 = vmatprep.subr.mxu0 0.0
    %987 = vmatpush1.msra.mxu0 0.0
    %988 = vmatprep.subr.mxu0 0.0
    %989 = vmatpush1.msra.mxu0 0.0
    %990 = vmatprep.subr.mxu0 0.0
    %991 = vmatpush1.msra.mxu0 0.0
    %992 = vmatprep.subr.mxu0 0.0
    %993 = vmatpush1.msra.mxu0 0.0
    %994 = vmatprep.subr.mxu0 0.0
    %995 = vmatpush1.msra.mxu0 0.0
    %996 = vmatprep.subr.mxu0 0.0
    %997 = vmatpush1.msra.mxu0 0.0
    %998 = vmatprep.subr.mxu0 0.0
    %999 = vmatpush1.msra.mxu0 0.0
    %1000 = vmatprep.subr.mxu0 0.0
    %1001 = vmatpush1.msra.mxu0 0.0
    %1002 = vmatprep.subr.mxu0 0.0
    %1003 = vmatpush1.msra.mxu0 0.0
    %1004 = vmatprep.subr.mxu0 0.0
    %1005 = vmatpush1.msra.mxu0 0.0
    %1006 = vmatprep.subr.mxu0 0.0
    %1007 = vmatpush1.msra.mxu0 0.0
    %1008 = vmatprep.subr.mxu0 0.0
    %1009 = vmatpush1.msra.mxu0 0.0
    %1010 = vmatprep.subr.mxu0 0.0
    %1011 = vmatpush1.msra.mxu0 0.0
    %1012 = vmatprep.mubr.f32.mxu0 0.0
    %1013 = vmatmul.mubr.f32.gmra.mrb[0].mxu0 %v947
    %v1014 = vpop.f32.mrb[0].mxu0
    %v1015 = vadd.f32 0.0, %v1014
    %v1016 = vpop.f32.mrb[0].mxu0
    %1017 = vdwg.mxu0
    %v1019 = vrot.slane %v1015, 7
    %v1021 = vadd.f32 %v831, %v1019
    %v1022 = vmul.f32 %v1021, %v196
    %v1023 = vtanh.pop %v1022
    %v1024 = vmul.f32 %v1023, %v196
    %v1025 = vadd.f32 %v1024, %v197
    %v1027 = vrot.slane %v935, 7
    %v1029 = vmul.f32 %v1025, %v1027
    %1031 = vrot.lane.b32.xlu0 %v1025, 64
    %v1032 = vpop.permute.xlu0 %1031
    %v1034 = vmul.f32 %v1025, %v1032
    %1036 = vrot.lane.b32.xlu0 %v1034, 32
    %v1037 = vpop.permute.xlu0 %1036
    %v1039 = vadd.f32 %v1029, %v1037
    %v1040 = vtanh.pop %v1039
    %1042 = vrot.lane.b32.xlu0 %v1040, 64
    %v1043 = vpop.permute.xlu0 %1042
    %v1045 = vmul.f32 %v1025, %v1043
    %1047 = vrot.lane.b32.xlu0 %v1045, 32
    %v1048 = vpop.permute.xlu0 %1047
    %v1050 = vsel %vm946, %v1048, 0.0
    %v1052 = vrot.slane %v1050, 1
    %1054 = vmatprep.subr.mxu0 0.0
    %1055 = vmatpush1.msra.mxu0 %v834
    %1056 = vmatprep.subr.mxu0 0.0
    %1057 = vmatpush1.msra.mxu0 %v835
    %1058 = vmatprep.subr.mxu0 0.0
    %1059 = vmatpush1.msra.mxu0 %v836
    %1060 = vmatprep.subr.mxu0 0.0
    %1061 = vmatpush1.msra.mxu0 %v837
    %1062 = vmatprep.subr.mxu0 0.0
    %1063 = vmatpush1.msra.mxu0 %v838
    %1064 = vmatprep.subr.mxu0 0.0
    %1065 = vmatpush1.msra.mxu0 %v839
    %1066 = vmatprep.subr.mxu0 0.0
    %1067 = vmatpush1.msra.mxu0 %v840
    %1068 = vmatprep.subr.mxu0 0.0
    %1069 = vmatpush1.msra.mxu0 %v841
    %1070 = vmatprep.subr.mxu0 0.0
    %1071 = vmatpush1.msra.mxu0 %v842
    %1072 = vmatprep.subr.mxu0 0.0
    %1073 = vmatpush1.msra.mxu0 %v843
    %1074 = vmatprep.subr.mxu0 0.0
    %1075 = vmatpush1.msra.mxu0 %v844
    %1076 = vmatprep.subr.mxu0 0.0
    %1077 = vmatpush1.msra.mxu0 %v845
    %1078 = vmatprep.subr.mxu0 0.0
    %1079 = vmatpush1.msra.mxu0 %v846
    %1080 = vmatprep.subr.mxu0 0.0
    %1081 = vmatpush1.msra.mxu0 %v847
    %1082 = vmatprep.subr.mxu0 0.0
    %1083 = vmatpush1.msra.mxu0 %v848
    %1084 = vmatprep.subr.mxu0 0.0
    %1085 = vmatpush1.msra.mxu0 %v849
    %1086 = vmatprep.subr.mxu0 0.0
    %1087 = vmatpush1.msra.mxu0 0.0
    %1088 = vmatprep.subr.mxu0 0.0
    %1089 = vmatpush1.msra.mxu0 0.0
    %1090 = vmatprep.subr.mxu0 0.0
    %1091 = vmatpush1.msra.mxu0 0.0
    %1092 = vmatprep.subr.mxu0 0.0
    %1093 = vmatpush1.msra.mxu0 0.0
    %1094 = vmatprep.subr.mxu0 0.0
    %1095 = vmatpush1.msra.mxu0 0.0
    %1096 = vmatprep.subr.mxu0 0.0
    %1097 = vmatpush1.msra.mxu0 0.0
    %1098 = vmatprep.subr.mxu0 0.0
    %1099 = vmatpush1.msra.mxu0 0.0
    %1100 = vmatprep.subr.mxu0 0.0
    %1101 = vmatpush1.msra.mxu0 0.0
    %1102 = vmatprep.subr.mxu0 0.0
    %1103 = vmatpush1.msra.mxu0 0.0
    %1104 = vmatprep.subr.mxu0 0.0
    %1105 = vmatpush1.msra.mxu0 0.0
    %1106 = vmatprep.subr.mxu0 0.0
    %1107 = vmatpush1.msra.mxu0 0.0
    %1108 = vmatprep.subr.mxu0 0.0
    %1109 = vmatpush1.msra.mxu0 0.0
    %1110 = vmatprep.subr.mxu0 0.0
    %1111 = vmatpush1.msra.mxu0 0.0
    %1112 = vmatprep.subr.mxu0 0.0
    %1113 = vmatpush1.msra.mxu0 0.0
    %1114 = vmatprep.subr.mxu0 0.0
    %1115 = vmatpush1.msra.mxu0 0.0
    %1116 = vmatprep.subr.mxu0 0.0
    %1117 = vmatpush1.msra.mxu0 0.0
    %1118 = vmatprep.mubr.f32.mxu0 0.0
    %1119 = vmatmul.mubr.f32.gmra.mrb[0].mxu0 %v1052
    %v1120 = vpop.f32.mrb[0].mxu0
    %v1121 = vadd.f32 0.0, %v1120
    %v1122 = vpop.f32.mrb[0].mxu0
    %1123 = vdwg.mxu0
    %v1125 = vrot.slane %v1121, 6
    %v1127 = vadd.f32 %v831, %v1125
    %v1128 = vmul.f32 %v1127, %v196
    %v1129 = vtanh.pop %v1128
    %v1130 = vmul.f32 %v1129, %v196
    %v1131 = vadd.f32 %v1130, %v197
    %v1133 = vrot.slane %v1039, 7
    %v1135 = vmul.f32 %v1131, %v1133
    %1137 = vrot.lane.b32.xlu0 %v1131, 64
    %v1138 = vpop.permute.xlu0 %1137
    %v1140 = vmul.f32 %v1131, %v1138
    %1142 = vrot.lane.b32.xlu0 %v1140, 32
    %v1143 = vpop.permute.xlu0 %1142
    %v1145 = vadd.f32 %v1135, %v1143
    %v1146 = vtanh.pop %v1145
    %1148 = vrot.lane.b32.xlu0 %v1146, 64
    %v1149 = vpop.permute.xlu0 %1148
    %v1151 = vmul.f32 %v1131, %v1149
    %1153 = vrot.lane.b32.xlu0 %v1151, 32
    %v1154 = vpop.permute.xlu0 %1153
    %v1156 = vsel %vm946, %v1154, 0.0
    %v1158 = vrot.slane %v1156, 2
    %1160 = vmatprep.subr.mxu0 0.0
    %1161 = vmatpush1.msra.mxu0 %v834
    %1162 = vmatprep.subr.mxu0 0.0
    %1163 = vmatpush1.msra.mxu0 %v835
    %1164 = vmatprep.subr.mxu0 0.0
    %1165 = vmatpush1.msra.mxu0 %v836
    %1166 = vmatprep.subr.mxu0 0.0
    %1167 = vmatpush1.msra.mxu0 %v837
    %1168 = vmatprep.subr.mxu0 0.0
    %1169 = vmatpush1.msra.mxu0 %v838
    %1170 = vmatprep.subr.mxu0 0.0
    %1171 = vmatpush1.msra.mxu0 %v839
    %1172 = vmatprep.subr.mxu0 0.0
    %1173 = vmatpush1.msra.mxu0 %v840
    %1174 = vmatprep.subr.mxu0 0.0
    %1175 = vmatpush1.msra.mxu0 %v841
    %1176 = vmatprep.subr.mxu0 0.0
    %1177 = vmatpush1.msra.mxu0 %v842
    %1178 = vmatprep.subr.mxu0 0.0
    %1179 = vmatpush1.msra.mxu0 %v843
    %1180 = vmatprep.subr.mxu0 0.0
    %1181 = vmatpush1.msra.mxu0 %v844
    %1182 = vmatprep.subr.mxu0 0.0
    %1183 = vmatpush1.msra.mxu0 %v845
    %1184 = vmatprep.subr.mxu0 0.0
    %1185 = vmatpush1.msra.mxu0 %v846
    %1186 = vmatprep.subr.mxu0 0.0
    %1187 = vmatpush1.msra.mxu0 %v847
    %1188 = vmatprep.subr.mxu0 0.0
    %1189 = vmatpush1.msra.mxu0 %v848
    %1190 = vmatprep.subr.mxu0 0.0
    %1191 = vmatpush1.msra.mxu0 %v849
    %1192 = vmatprep.subr.mxu0 0.0
    %1193 = vmatpush1.msra.mxu0 0.0
    %1194 = vmatprep.subr.mxu0 0.0
    %1195 = vmatpush1.msra.mxu0 0.0
    %1196 = vmatprep.subr.mxu0 0.0
    %1197 = vmatpush1.msra.mxu0 0.0
    %1198 = vmatprep.subr.mxu0 0.0
    %1199 = vmatpush1.msra.mxu0 0.0
    %1200 = vmatprep.subr.mxu0 0.0
    %1201 = vmatpush1.msra.mxu0 0.0
    %1202 = vmatprep.subr.mxu0 0.0
    %1203 = vmatpush1.msra.mxu0 0.0
    %1204 = vmatprep.subr.mxu0 0.0
    %1205 = vmatpush1.msra.mxu0 0.0
    %1206 = vmatprep.subr.mxu0 0.0
    %1207 = vmatpush1.msra.mxu0 0.0
    %1208 = vmatprep.subr.mxu0 0.0
    %1209 = vmatpush1.msra.mxu0 0.0
    %1210 = vmatprep.subr.mxu0 0.0
    %1211 = vmatpush1.msra.mxu0 0.0
    %1212 = vmatprep.subr.mxu0 0.0
    %1213 = vmatpush1.msra.mxu0 0.0
    %1214 = vmatprep.subr.mxu0 0.0
    %1215 = vmatpush1.msra.mxu0 0.0
    %1216 = vmatprep.subr.mxu0 0.0
    %1217 = vmatpush1.msra.mxu0 0.0
    %1218 = vmatprep.subr.mxu0 0.0
    %1219 = vmatpush1.msra.mxu0 0.0
    %1220 = vmatprep.subr.mxu0 0.0
    %1221 = vmatpush1.msra.mxu0 0.0
    %1222 = vmatprep.subr.mxu0 0.0
    %1223 = vmatpush1.msra.mxu0 0.0
    %1224 = vmatprep.mubr.f32.mxu0 0.0
    %1225 = vmatmul.mubr.f32.gmra.mrb[0].mxu0 %v1158
    %v1226 = vpop.f32.mrb[0].mxu0
    %v1227 = vadd.f32 0.0, %v1226
    %v1228 = vpop.f32.mrb[0].mxu0
    %1229 = vdwg.mxu0
    %v1231 = vrot.slane %v1227, 5
    %v1233 = vadd.f32 %v831, %v1231
    %v1234 = vmul.f32 %v1233, %v196
    %v1235 = vtanh.pop %v1234
    %v1236 = vmul.f32 %v1235, %v196
    %v1237 = vadd.f32 %v1236, %v197
    %v1239 = vrot.slane %v1145, 7
    %v1241 = vmul.f32 %v1237, %v1239
    %1243 = vrot.lane.b32.xlu0 %v1237, 64
    %v1244 = vpop.permute.xlu0 %1243
    %v1246 = vmul.f32 %v1237, %v1244
    %1248 = vrot.lane.b32.xlu0 %v1246, 32
    %v1249 = vpop.permute.xlu0 %1248
    %v1251 = vadd.f32 %v1241, %v1249
    %v1252 = vtanh.pop %v1251
    %1254 = vrot.lane.b32.xlu0 %v1252, 64
    %v1255 = vpop.permute.xlu0 %1254
    %v1257 = vmul.f32 %v1237, %v1255
    %1259 = vrot.lane.b32.xlu0 %v1257, 32
    %v1260 = vpop.permute.xlu0 %1259
    %v1262 = vsel %vm946, %v1260, 0.0
    %v1264 = vrot.slane %v1262, 3
    %1266 = vmatprep.subr.mxu0 0.0
    %1267 = vmatpush1.msra.mxu0 %v834
    %1268 = vmatprep.subr.mxu0 0.0
    %1269 = vmatpush1.msra.mxu0 %v835
    %1270 = vmatprep.subr.mxu0 0.0
    %1271 = vmatpush1.msra.mxu0 %v836
    %1272 = vmatprep.subr.mxu0 0.0
    %1273 = vmatpush1.msra.mxu0 %v837
    %1274 = vmatprep.subr.mxu0 0.0
    %1275 = vmatpush1.msra.mxu0 %v838
    %1276 = vmatprep.subr.mxu0 0.0
    %1277 = vmatpush1.msra.mxu0 %v839
    %1278 = vmatprep.subr.mxu0 0.0
    %1279 = vmatpush1.msra.mxu0 %v840
    %1280 = vmatprep.subr.mxu0 0.0
    %1281 = vmatpush1.msra.mxu0 %v841
    %1282 = vmatprep.subr.mxu0 0.0
    %1283 = vmatpush1.msra.mxu0 %v842
    %1284 = vmatprep.subr.mxu0 0.0
    %1285 = vmatpush1.msra.mxu0 %v843
    %1286 = vmatprep.subr.mxu0 0.0
    %1287 = vmatpush1.msra.mxu0 %v844
    %1288 = vmatprep.subr.mxu0 0.0
    %1289 = vmatpush1.msra.mxu0 %v845
    %1290 = vmatprep.subr.mxu0 0.0
    %1291 = vmatpush1.msra.mxu0 %v846
    %1292 = vmatprep.subr.mxu0 0.0
    %1293 = vmatpush1.msra.mxu0 %v847
    %1294 = vmatprep.subr.mxu0 0.0
    %1295 = vmatpush1.msra.mxu0 %v848
    %1296 = vmatprep.subr.mxu0 0.0
    %1297 = vmatpush1.msra.mxu0 %v849
    %1298 = vmatprep.subr.mxu0 0.0
    %1299 = vmatpush1.msra.mxu0 0.0
    %1300 = vmatprep.subr.mxu0 0.0
    %1301 = vmatpush1.msra.mxu0 0.0
    %1302 = vmatprep.subr.mxu0 0.0
    %1303 = vmatpush1.msra.mxu0 0.0
    %1304 = vmatprep.subr.mxu0 0.0
    %1305 = vmatpush1.msra.mxu0 0.0
    %1306 = vmatprep.subr.mxu0 0.0
    %1307 = vmatpush1.msra.mxu0 0.0
    %1308 = vmatprep.subr.mxu0 0.0
    %1309 = vmatpush1.msra.mxu0 0.0
    %1310 = vmatprep.subr.mxu0 0.0
    %1311 = vmatpush1.msra.mxu0 0.0
    %1312 = vmatprep.subr.mxu0 0.0
    %1313 = vmatpush1.msra.mxu0 0.0
    %1314 = vmatprep.subr.mxu0 0.0
    %1315 = vmatpush1.msra.mxu0 0.0
    %1316 = vmatprep.subr.mxu0 0.0
    %1317 = vmatpush1.msra.mxu0 0.0
    %1318 = vmatprep.subr.mxu0 0.0
    %1319 = vmatpush1.msra.mxu0 0.0
    %1320 = vmatprep.subr.mxu0 0.0
    %1321 = vmatpush1.msra.mxu0 0.0
    %1322 = vmatprep.subr.mxu0 0.0
    %1323 = vmatpush1.msra.mxu0 0.0
    %1324 = vmatprep.subr.mxu0 0.0
    %1325 = vmatpush1.msra.mxu0 0.0
    %1326 = vmatprep.subr.mxu0 0.0
    %1327 = vmatpush1.msra.mxu0 0.0
    %1328 = vmatprep.subr.mxu0 0.0
    %1329 = vmatpush1.msra.mxu0 0.0
    %1330 = vmatprep.mubr.f32.mxu0 0.0
    %1331 = vmatmul.mubr.f32.gmra.mrb[0].mxu0 %v1264
    %v1332 = vpop.f32.mrb[0].mxu0
    %v1333 = vadd.f32 0.0, %v1332
    %v1334 = vpop.f32.mrb[0].mxu0
    %1335 = vdwg.mxu0
    %v1337 = vrot.slane %v1333, 4
    %v1339 = vadd.f32 %v831, %v1337
    %v1340 = vmul.f32 %v1339, %v196
    %v1341 = vtanh.pop %v1340
    %v1342 = vmul.f32 %v1341, %v196
    %v1343 = vadd.f32 %v1342, %v197
    %v1345 = vrot.slane %v1251, 7
    %v1347 = vmul.f32 %v1343, %v1345
    %1349 = vrot.lane.b32.xlu0 %v1343, 64
    %v1350 = vpop.permute.xlu0 %1349
    %v1352 = vmul.f32 %v1343, %v1350
    %1354 = vrot.lane.b32.xlu0 %v1352, 32
    %v1355 = vpop.permute.xlu0 %1354
    %v1357 = vadd.f32 %v1347, %v1355
    %v1358 = vtanh.pop %v1357
    %1360 = vrot.lane.b32.xlu0 %v1358, 64
    %v1361 = vpop.permute.xlu0 %1360
    %v1363 = vmul.f32 %v1343, %v1361
    %1365 = vrot.lane.b32.xlu0 %v1363, 32
    %v1366 = vpop.permute.xlu0 %1365
    %v1368 = vsel %vm946, %v1366, 0.0
    %v1370 = vrot.slane %v1368, 4
    %1372 = vmatprep.subr.mxu0 0.0
    %1373 = vmatpush1.msra.mxu0 %v834
    %1374 = vmatprep.subr.mxu0 0.0
    %1375 = vmatpush1.msra.mxu0 %v835
    %1376 = vmatprep.subr.mxu0 0.0
    %1377 = vmatpush1.msra.mxu0 %v836
    %1378 = vmatprep.subr.mxu0 0.0
    %1379 = vmatpush1.msra.mxu0 %v837
    %1380 = vmatprep.subr.mxu0 0.0
    %1381 = vmatpush1.msra.mxu0 %v838
    %1382 = vmatprep.subr.mxu0 0.0
    %1383 = vmatpush1.msra.mxu0 %v839
    %1384 = vmatprep.subr.mxu0 0.0
    %1385 = vmatpush1.msra.mxu0 %v840
    %1386 = vmatprep.subr.mxu0 0.0
    %1387 = vmatpush1.msra.mxu0 %v841
    %1388 = vmatprep.subr.mxu0 0.0
    %1389 = vmatpush1.msra.mxu0 %v842
    %1390 = vmatprep.subr.mxu0 0.0
    %1391 = vmatpush1.msra.mxu0 %v843
    %1392 = vmatprep.subr.mxu0 0.0
    %1393 = vmatpush1.msra.mxu0 %v844
    %1394 = vmatprep.subr.mxu0 0.0
    %1395 = vmatpush1.msra.mxu0 %v845
    %1396 = vmatprep.subr.mxu0 0.0
    %1397 = vmatpush1.msra.mxu0 %v846
    %1398 = vmatprep.subr.mxu0 0.0
    %1399 = vmatpush1.msra.mxu0 %v847
    %1400 = vmatprep.subr.mxu0 0.0
    %1401 = vmatpush1.msra.mxu0 %v848
    %1402 = vmatprep.subr.mxu0 0.0
    %1403 = vmatpush1.msra.mxu0 %v849
    %1404 = vmatprep.subr.mxu0 0.0
    %1405 = vmatpush1.msra.mxu0 0.0
    %1406 = vmatprep.subr.mxu0 0.0
    %1407 = vmatpush1.msra.mxu0 0.0
    %1408 = vmatprep.subr.mxu0 0.0
    %1409 = vmatpush1.msra.mxu0 0.0
    %1410 = vmatprep.subr.mxu0 0.0
    %1411 = vmatpush1.msra.mxu0 0.0
    %1412 = vmatprep.subr.mxu0 0.0
    %1413 = vmatpush1.msra.mxu0 0.0
    %1414 = vmatprep.subr.mxu0 0.0
    %1415 = vmatpush1.msra.mxu0 0.0
    %1416 = vmatprep.subr.mxu0 0.0
    %1417 = vmatpush1.msra.mxu0 0.0
    %1418 = vmatprep.subr.mxu0 0.0
    %1419 = vmatpush1.msra.mxu0 0.0
    %1420 = vmatprep.subr.mxu0 0.0
    %1421 = vmatpush1.msra.mxu0 0.0
    %1422 = vmatprep.subr.mxu0 0.0
    %1423 = vmatpush1.msra.mxu0 0.0
    %1424 = vmatprep.subr.mxu0 0.0
    %1425 = vmatpush1.msra.mxu0 0.0
    %1426 = vmatprep.subr.mxu0 0.0
    %1427 = vmatpush1.msra.mxu0 0.0
    %1428 = vmatprep.subr.mxu0 0.0
    %1429 = vmatpush1.msra.mxu0 0.0
    %1430 = vmatprep.subr.mxu0 0.0
    %1431 = vmatpush1.msra.mxu0 0.0
    %1432 = vmatprep.subr.mxu0 0.0
    %1433 = vmatpush1.msra.mxu0 0.0
    %1434 = vmatprep.subr.mxu0 0.0
    %1435 = vmatpush1.msra.mxu0 0.0
    %1436 = vmatprep.mubr.f32.mxu0 0.0
    %1437 = vmatmul.mubr.f32.gmra.mrb[0].mxu0 %v1370
    %v1438 = vpop.f32.mrb[0].mxu0
    %v1439 = vadd.f32 0.0, %v1438
    %v1440 = vpop.f32.mrb[0].mxu0
    %1441 = vdwg.mxu0
    %v1443 = vrot.slane %v1439, 3
    %v1445 = vadd.f32 %v831, %v1443
    %v1446 = vmul.f32 %v1445, %v196
    %v1447 = vtanh.pop %v1446
    %v1448 = vmul.f32 %v1447, %v196
    %v1449 = vadd.f32 %v1448, %v197
    %v1451 = vrot.slane %v1357, 7
    %v1453 = vmul.f32 %v1449, %v1451
    %1455 = vrot.lane.b32.xlu0 %v1449, 64
    %v1456 = vpop.permute.xlu0 %1455
    %v1458 = vmul.f32 %v1449, %v1456
    %1460 = vrot.lane.b32.xlu0 %v1458, 32
    %v1461 = vpop.permute.xlu0 %1460
    %v1463 = vadd.f32 %v1453, %v1461
    %v1464 = vtanh.pop %v1463
    %1466 = vrot.lane.b32.xlu0 %v1464, 64
    %v1467 = vpop.permute.xlu0 %1466
    %v1469 = vmul.f32 %v1449, %v1467
    %1471 = vrot.lane.b32.xlu0 %v1469, 32
    %v1472 = vpop.permute.xlu0 %1471
    %v1474 = vsel %vm946, %v1472, 0.0
    %v1476 = vrot.slane %v1474, 5
    %1478 = vmatprep.subr.mxu0 0.0
    %1479 = vmatpush1.msra.mxu0 %v834
    %1480 = vmatprep.subr.mxu0 0.0
    %1481 = vmatpush1.msra.mxu0 %v835
    %1482 = vmatprep.subr.mxu0 0.0
    %1483 = vmatpush1.msra.mxu0 %v836
    %1484 = vmatprep.subr.mxu0 0.0
    %1485 = vmatpush1.msra.mxu0 %v837
    %1486 = vmatprep.subr.mxu0 0.0
    %1487 = vmatpush1.msra.mxu0 %v838
    %1488 = vmatprep.subr.mxu0 0.0
    %1489 = vmatpush1.msra.mxu0 %v839
    %1490 = vmatprep.subr.mxu0 0.0
    %1491 = vmatpush1.msra.mxu0 %v840
    %1492 = vmatprep.subr.mxu0 0.0
    %1493 = vmatpush1.msra.mxu0 %v841
    %1494 = vmatprep.subr.mxu0 0.0
    %1495 = vmatpush1.msra.mxu0 %v842
    %1496 = vmatprep.subr.mxu0 0.0
    %1497 = vmatpush1.msra.mxu0 %v843
    %1498 = vmatprep.subr.mxu0 0.0
    %1499 = vmatpush1.msra.mxu0 %v844
    %1500 = vmatprep.subr.mxu0 0.0
    %1501 = vmatpush1.msra.mxu0 %v845
    %1502 = vmatprep.subr.mxu0 0.0
    %1503 = vmatpush1.msra.mxu0 %v846
    %1504 = vmatprep.subr.mxu0 0.0
    %1505 = vmatpush1.msra.mxu0 %v847
    %1506 = vmatprep.subr.mxu0 0.0
    %1507 = vmatpush1.msra.mxu0 %v848
    %1508 = vmatprep.subr.mxu0 0.0
    %1509 = vmatpush1.msra.mxu0 %v849
    %1510 = vmatprep.subr.mxu0 0.0
    %1511 = vmatpush1.msra.mxu0 0.0
    %1512 = vmatprep.subr.mxu0 0.0
    %1513 = vmatpush1.msra.mxu0 0.0
    %1514 = vmatprep.subr.mxu0 0.0
    %1515 = vmatpush1.msra.mxu0 0.0
    %1516 = vmatprep.subr.mxu0 0.0
    %1517 = vmatpush1.msra.mxu0 0.0
    %1518 = vmatprep.subr.mxu0 0.0
    %1519 = vmatpush1.msra.mxu0 0.0
    %1520 = vmatprep.subr.mxu0 0.0
    %1521 = vmatpush1.msra.mxu0 0.0
    %1522 = vmatprep.subr.mxu0 0.0
    %1523 = vmatpush1.msra.mxu0 0.0
    %1524 = vmatprep.subr.mxu0 0.0
    %1525 = vmatpush1.msra.mxu0 0.0
    %1526 = vmatprep.subr.mxu0 0.0
    %1527 = vmatpush1.msra.mxu0 0.0
    %1528 = vmatprep.subr.mxu0 0.0
    %1529 = vmatpush1.msra.mxu0 0.0
    %1530 = vmatprep.subr.mxu0 0.0
    %1531 = vmatpush1.msra.mxu0 0.0
    %1532 = vmatprep.subr.mxu0 0.0
    %1533 = vmatpush1.msra.mxu0 0.0
    %1534 = vmatprep.subr.mxu0 0.0
    %1535 = vmatpush1.msra.mxu0 0.0
    %1536 = vmatprep.subr.mxu0 0.0
    %1537 = vmatpush1.msra.mxu0 0.0
    %1538 = vmatprep.subr.mxu0 0.0
    %1539 = vmatpush1.msra.mxu0 0.0
    %1540 = vmatprep.subr.mxu0 0.0
    %1541 = vmatpush1.msra.mxu0 0.0
    %1542 = vmatprep.mubr.f32.mxu0 0.0
    %1543 = vmatmul.mubr.f32.gmra.mrb[0].mxu0 %v1476
    %v1544 = vpop.f32.mrb[0].mxu0
    %v1545 = vadd.f32 0.0, %v1544
    %v1546 = vpop.f32.mrb[0].mxu0
    %1547 = vdwg.mxu0
    %v1549 = vrot.slane %v1545, 2
    %v1551 = vadd.f32 %v831, %v1549
    %v1552 = vmul.f32 %v1551, %v196
    %v1553 = vtanh.pop %v1552
    %v1554 = vmul.f32 %v1553, %v196
    %v1555 = vadd.f32 %v1554, %v197
    %v1557 = vrot.slane %v1463, 7
    %v1559 = vmul.f32 %v1555, %v1557
    %1561 = vrot.lane.b32.xlu0 %v1555, 64
    %v1562 = vpop.permute.xlu0 %1561
    %v1564 = vmul.f32 %v1555, %v1562
    %1566 = vrot.lane.b32.xlu0 %v1564, 32
    %v1567 = vpop.permute.xlu0 %1566
    %v1569 = vadd.f32 %v1559, %v1567
    %v1570 = vtanh.pop %v1569
    %1572 = vrot.lane.b32.xlu0 %v1570, 64
    %v1573 = vpop.permute.xlu0 %1572
    %v1575 = vmul.f32 %v1555, %v1573
    %1577 = vrot.lane.b32.xlu0 %v1575, 32
    %v1578 = vpop.permute.xlu0 %1577
    %v1580 = vsel %vm946, %v1578, 0.0
    %v1582 = vrot.slane %v1580, 6
    %1584 = vmatprep.subr.mxu0 0.0
    %1585 = vmatpush1.msra.mxu0 %v834
    %1586 = vmatprep.subr.mxu0 0.0
    %1587 = vmatpush1.msra.mxu0 %v835
    %1588 = vmatprep.subr.mxu0 0.0
    %1589 = vmatpush1.msra.mxu0 %v836
    %1590 = vmatprep.subr.mxu0 0.0
    %1591 = vmatpush1.msra.mxu0 %v837
    %1592 = vmatprep.subr.mxu0 0.0
    %1593 = vmatpush1.msra.mxu0 %v838
    %1594 = vmatprep.subr.mxu0 0.0
    %1595 = vmatpush1.msra.mxu0 %v839
    %1596 = vmatprep.subr.mxu0 0.0
    %1597 = vmatpush1.msra.mxu0 %v840
    %1598 = vmatprep.subr.mxu0 0.0
    %1599 = vmatpush1.msra.mxu0 %v841
    %1600 = vmatprep.subr.mxu0 0.0
    %1601 = vmatpush1.msra.mxu0 %v842
    %1602 = vmatprep.subr.mxu0 0.0
    %1603 = vmatpush1.msra.mxu0 %v843
    %1604 = vmatprep.subr.mxu0 0.0
    %1605 = vmatpush1.msra.mxu0 %v844
    %1606 = vmatprep.subr.mxu0 0.0
    %1607 = vmatpush1.msra.mxu0 %v845
    %1608 = vmatprep.subr.mxu0 0.0
    %1609 = vmatpush1.msra.mxu0 %v846
    %1610 = vmatprep.subr.mxu0 0.0
    %1611 = vmatpush1.msra.mxu0 %v847
    %1612 = vmatprep.subr.mxu0 0.0
    %1613 = vmatpush1.msra.mxu0 %v848
    %1614 = vmatprep.subr.mxu0 0.0
    %1615 = vmatpush1.msra.mxu0 %v849
    %1616 = vmatprep.subr.mxu0 0.0
    %1617 = vmatpush1.msra.mxu0 0.0
    %1618 = vmatprep.subr.mxu0 0.0
    %1619 = vmatpush1.msra.mxu0 0.0
    %1620 = vmatprep.subr.mxu0 0.0
    %1621 = vmatpush1.msra.mxu0 0.0
    %1622 = vmatprep.subr.mxu0 0.0
    %1623 = vmatpush1.msra.mxu0 0.0
    %1624 = vmatprep.subr.mxu0 0.0
    %1625 = vmatpush1.msra.mxu0 0.0
    %1626 = vmatprep.subr.mxu0 0.0
    %1627 = vmatpush1.msra.mxu0 0.0
    %1628 = vmatprep.subr.mxu0 0.0
    %1629 = vmatpush1.msra.mxu0 0.0
    %1630 = vmatprep.subr.mxu0 0.0
    %1631 = vmatpush1.msra.mxu0 0.0
    %1632 = vmatprep.subr.mxu0 0.0
    %1633 = vmatpush1.msra.mxu0 0.0
    %1634 = vmatprep.subr.mxu0 0.0
    %1635 = vmatpush1.msra.mxu0 0.0
    %1636 = vmatprep.subr.mxu0 0.0
    %1637 = vmatpush1.msra.mxu0 0.0
    %1638 = vmatprep.subr.mxu0 0.0
    %1639 = vmatpush1.msra.mxu0 0.0
    %1640 = vmatprep.subr.mxu0 0.0
    %1641 = vmatpush1.msra.mxu0 0.0
    %1642 = vmatprep.subr.mxu0 0.0
    %1643 = vmatpush1.msra.mxu0 0.0
    %1644 = vmatprep.subr.mxu0 0.0
    %1645 = vmatpush1.msra.mxu0 0.0
    %1646 = vmatprep.subr.mxu0 0.0
    %1647 = vmatpush1.msra.mxu0 0.0
    %1648 = vmatprep.mubr.f32.mxu0 0.0
    %1649 = vmatmul.mubr.f32.gmra.mrb[0].mxu0 %v1582
    %v1650 = vpop.f32.mrb[0].mxu0
    %v1651 = vadd.f32 0.0, %v1650
    %v1652 = vpop.f32.mrb[0].mxu0
    %1653 = vdwg.mxu0
    %v1655 = vrot.slane %v1651, 1
    %v1657 = vadd.f32 %v831, %v1655
    %v1658 = vmul.f32 %v1657, %v196
    %v1659 = vtanh.pop %v1658
    %v1660 = vmul.f32 %v1659, %v196
    %v1661 = vadd.f32 %v1660, %v197
    %v1663 = vrot.slane %v1569, 7
    %v1665 = vmul.f32 %v1661, %v1663
    %1667 = vrot.lane.b32.xlu0 %v1661, 64
    %v1668 = vpop.permute.xlu0 %1667
    %v1670 = vmul.f32 %v1661, %v1668
    %1672 = vrot.lane.b32.xlu0 %v1670, 32
    %v1673 = vpop.permute.xlu0 %1672
    %v1675 = vadd.f32 %v1665, %v1673
    %v1676 = vtanh.pop %v1675
    %1678 = vrot.lane.b32.xlu0 %v1676, 64
    %v1679 = vpop.permute.xlu0 %1678
    %v1681 = vmul.f32 %v1661, %v1679
    %1683 = vrot.lane.b32.xlu0 %v1681, 32
    %v1684 = vpop.permute.xlu0 %1683
    %v1686 = vsel %vm946, %v1684, 0.0
    %vm1687 = vcmask 1040384
    %v1688 = vsel %vm1687, %v947, %v1050
    %vm1689 = vcmask 1041408
    %v1690 = vsel %vm1689, %v1688, %v1156
    %vm1691 = vcmask 1042432
    %v1692 = vsel %vm1691, %v1690, %v1262
    %vm1693 = vcmask 1043456
    %v1694 = vsel %vm1693, %v1692, %v1368
    %vm1695 = vcmask 1044480
    %v1696 = vsel %vm1695, %v1694, %v1474
    %vm1697 = vcmask 1045504
    %v1698 = vsel %vm1697, %v1696, %v1580
    %vm1699 = vcmask 1046528
    %v1700 = vsel %vm1699, %v1698, %v1686
    %v1701 = vld [vmem:[%s7] sm:$0xff]
    %v1702 = vld [vmem:[%s7 + $0x8] sm:$0xff]
    %v1703 = vld [vmem:[%s7 + $0x10] sm:$0xff]
    %v1704 = vld [vmem:[%s7 + $0x18] sm:$0xff]
    %v1705 = vld [vmem:[%s7 + $0x20] sm:$0xff]
    %v1706 = vld [vmem:[%s7 + $0x28] sm:$0xff]
    %v1707 = vld [vmem:[%s7 + $0x30] sm:$0xff]
    %v1708 = vld [vmem:[%s7 + $0x38] sm:$0xff]
    %v1709 = vld [vmem:[%s7 + $0x40] sm:$0xff]
    %v1710 = vld [vmem:[%s7 + $0x48] sm:$0xff]
    %v1711 = vld [vmem:[%s7 + $0x50] sm:$0xff]
    %v1712 = vld [vmem:[%s7 + $0x58] sm:$0xff]
    %v1713 = vld [vmem:[%s7 + $0x60] sm:$0xff]
    %v1714 = vld [vmem:[%s7 + $0x68] sm:$0xff]
    %v1715 = vld [vmem:[%s7 + $0x70] sm:$0xff]
    %v1716 = vld [vmem:[%s7 + $0x78] sm:$0xff]
    %v1717 = vld [vmem:[%s8] sm:$0x1]
    %v1719 = vlaneseq
    %v1720 = vshrl.u32 %v1719, 7
    %v1721 = vsub.s32 0, %v1720
    %v1722 = vrot.slane %v1717, %v1721
    %1724 = vmatprep.subr.mxu0 0.0
    %1725 = vmatpush1.msra.mxu0 %v1701
    %1726 = vmatprep.subr.mxu0 0.0
    %1727 = vmatpush1.msra.mxu0 %v1702
    %1728 = vmatprep.subr.mxu0 0.0
    %1729 = vmatpush1.msra.mxu0 %v1703
    %1730 = vmatprep.subr.mxu0 0.0
    %1731 = vmatpush1.msra.mxu0 %v1704
    %1732 = vmatprep.subr.mxu0 0.0
    %1733 = vmatpush1.msra.mxu0 %v1705
    %1734 = vmatprep.subr.mxu0 0.0
    %1735 = vmatpush1.msra.mxu0 %v1706
    %1736 = vmatprep.subr.mxu0 0.0
    %1737 = vmatpush1.msra.mxu0 %v1707
    %1738 = vmatprep.subr.mxu0 0.0
    %1739 = vmatpush1.msra.mxu0 %v1708
    %1740 = vmatprep.subr.mxu0 0.0
    %1741 = vmatpush1.msra.mxu0 %v1709
    %1742 = vmatprep.subr.mxu0 0.0
    %1743 = vmatpush1.msra.mxu0 %v1710
    %1744 = vmatprep.subr.mxu0 0.0
    %1745 = vmatpush1.msra.mxu0 %v1711
    %1746 = vmatprep.subr.mxu0 0.0
    %1747 = vmatpush1.msra.mxu0 %v1712
    %1748 = vmatprep.subr.mxu0 0.0
    %1749 = vmatpush1.msra.mxu0 %v1713
    %1750 = vmatprep.subr.mxu0 0.0
    %1751 = vmatpush1.msra.mxu0 %v1714
    %1752 = vmatprep.subr.mxu0 0.0
    %1753 = vmatpush1.msra.mxu0 %v1715
    %1754 = vmatprep.subr.mxu0 0.0
    %1755 = vmatpush1.msra.mxu0 %v1716
    %1756 = vmatprep.subr.mxu0 0.0
    %1757 = vmatpush1.msra.mxu0 0.0
    %1758 = vmatprep.subr.mxu0 0.0
    %1759 = vmatpush1.msra.mxu0 0.0
    %1760 = vmatprep.subr.mxu0 0.0
    %1761 = vmatpush1.msra.mxu0 0.0
    %1762 = vmatprep.subr.mxu0 0.0
    %1763 = vmatpush1.msra.mxu0 0.0
    %1764 = vmatprep.subr.mxu0 0.0
    %1765 = vmatpush1.msra.mxu0 0.0
    %1766 = vmatprep.subr.mxu0 0.0
    %1767 = vmatpush1.msra.mxu0 0.0
    %1768 = vmatprep.subr.mxu0 0.0
    %1769 = vmatpush1.msra.mxu0 0.0
    %1770 = vmatprep.subr.mxu0 0.0
    %1771 = vmatpush1.msra.mxu0 0.0
    %1772 = vmatprep.subr.mxu0 0.0
    %1773 = vmatpush1.msra.mxu0 0.0
    %1774 = vmatprep.subr.mxu0 0.0
    %1775 = vmatpush1.msra.mxu0 0.0
    %1776 = vmatprep.subr.mxu0 0.0
    %1777 = vmatpush1.msra.mxu0 0.0
    %1778 = vmatprep.subr.mxu0 0.0
    %1779 = vmatpush1.msra.mxu0 0.0
    %1780 = vmatprep.subr.mxu0 0.0
    %1781 = vmatpush1.msra.mxu0 0.0
    %1782 = vmatprep.subr.mxu0 0.0
    %1783 = vmatpush1.msra.mxu0 0.0
    %1784 = vmatprep.subr.mxu0 0.0
    %1785 = vmatpush1.msra.mxu0 0.0
    %1786 = vmatprep.subr.mxu0 0.0
    %1787 = vmatpush1.msra.mxu0 0.0
    %1788 = vmatprep.mubr.f32.mxu0 0.0
    %1789 = vmatmul.mubr.f32.gmra.mrb[0].mxu0 %v1700
    %v1790 = vpop.f32.mrb[0].mxu0
    %v1791 = vadd.f32 %v1722, %v1790
    %v1792 = vpop.f32.mrb[0].mxu0
    %1793 = vdwg.mxu0
    %vm1794 = vcmask 48128
    %v1795 = vsel %vm1794, %v1791, -inf
    %1796 = vmax.xlane.f32.xlu0 %v1795
    %v1797 = vpop.xlane.xlu0 %1796
    %v1798 = vsub.f32 %v1791, %v1797
    %v1799 = vmul.f32 %v1798, 1.442695
    %v1800 = vpow.pop %v1799
    %v1801 = vsel %vm1794, %v1800, 0.0
    %1802 = vadd.xlane.f32.xlu0 %v1801
    %v1803 = vpop.xlane.xlu0 %1802
    %v1804 = vlog2.pop %v1803
    %v1805 = vmul.f32 %v1804, 0.6931472
    %v1806 = vadd.f32 %v1797, %v1805
    %v1807 = vsub.f32 %v1791, %v1806
    %1808 = vst.msk [vmem:[#allocation2] sm:$0xff] %vm1794, %v1807
    // Predicated region
    $region38: #{_forward_impl.1} parent=1 // pred_check
      _
    $region39: #{_forward_impl.1} parent=1 // pred_check_branch
      %1810 = sbr.rel (0) target = $region41
    $region40: #{_forward_impl.1} parent=1 // pred_region
      %s1812 = ssub.s32 128, 128
      %1813 = vsyncadd [#allocation3], %s1812
      %s1815 = sshll.u32 [#allocation2], 4
      %s1816 = int_to_ptr.vmem [resolvable:$true] %s1815
      %1818 = dma.vmem_to_hbm [thread:$0]  %s1816, 128, %s9, [#allocation3]
    $region41: #{_forward_impl.1} parent=1 // pred_fallthru
      _
    // Predicated region
    $region42: #{_forward_impl.1} parent=1 // pred_check
      _
    $region43: #{_forward_impl.1} parent=1 // pred_check_branch
      %1820 = sbr.rel (0) target = $region45
    $region44: #{_forward_impl.1} parent=1 // pred_region
      %1821 = dma.done [#allocation3], 128
    $region45: #{_forward_impl.1} parent=1 // pred_fallthru
      _
    %1822 = vsyncpa [#allocation3], 1

</llo_original>
